<compile_context>
chip_gen: v7x
topology: tpu7x:2x2x1
jax: 0.10.0
libtpu: 0.0.40
codegen_flags: <defaults>
</compile_context>

<pallas_src>
import functools

import jax
import jax.numpy as jnp
from jax.experimental import pallas as pl
from jax.experimental.pallas import tpu as pltpu

K = 7           # conv kernel size (odd)
PAD = K // 2    # 'same' padding


def _sa_kernel(w_ref, b_ref, rc_ref, x_ref, o_ref, sum_ref, max_ref, *, H, W, KS):
    # w_ref  : SMEM (2*KS*KS,) conv taps (order: in_ch, kh, kw); avg-channel taps
    #          are pre-scaled by 1/C (kernel feeds the channel SUM).
    # b_ref  : SMEM (1,) conv bias.
    # rc_ref : VMEM (2, HW) int32 — row index / col index of each flattened pixel
    #          (precomputed in the wrapper: no per-step vector int div/mod).
    # x_ref  : VMEM (TN, TC, HW) lane-dense input chunk.
    # o_ref  : VMEM (TN, 1, HW) output block (written on the last channel step only).
    # sum_ref / max_ref : VMEM (TN, HW) f32 running channel sum / max accumulators.
    pad = KS // 2
    HW = H * W
    TN, TC = x_ref.shape[0], x_ref.shape[1]
    c_step = pl.program_id(1)
    last_c = pl.num_programs(1) - 1

    # ---- channel reduction for this chunk: 4 independent sum/max chains ----
    n_ch = min(4, TC)
    ps = [x_ref[:, c, :].astype(jnp.float32) for c in range(n_ch)]
    pm = list(ps)
    for c in range(n_ch, TC):
        xc = x_ref[:, c, :].astype(jnp.float32)
        j = c % n_ch
        ps[j] = ps[j] + xc
        pm[j] = jnp.maximum(pm[j], xc)
    while len(ps) > 1:                                   # tree combine
        ns = [ps[i] + ps[i + 1] for i in range(0, len(ps) - 1, 2)]
        nm = [jnp.maximum(pm[i], pm[i + 1]) for i in range(0, len(pm) - 1, 2)]
        if len(ps) % 2:
            ns.append(ps[-1])
            nm.append(pm[-1])
        ps, pm = ns, nm
    s, m = ps[0], pm[0]

    @pl.when(c_step == 0)
    def _():
        sum_ref[...] = s
        max_ref[...] = m

    @pl.when(c_step != 0)
    def _():
        sum_ref[...] = sum_ref[...] + s
        max_ref[...] = jnp.maximum(max_ref[...], m)

    # ---- conv(KSxKS, same padding) + sigmoid, only on the last channel step ----
    @pl.when(c_step == last_c)
    def _():
        ssum = sum_ref[...]                              # channel SUM (1/C in weights)
        smax = max_ref[...]
        row = rc_ref[0:1, :]                             # (1, HW) int32
        col = rc_ref[1:2, :]

        # Factored conv: precompute KS column-shifted (+col-masked) copies of the
        # sum/max maps once, then per row offset do a pure-FMA reduction, ONE row
        # roll and ONE row mask.  ~18 rolls total instead of KS*KS*2.
        cols = []
        for dj in range(KS):
            oj = dj - pad
            shift = (-oj) % HW
            rs = ssum if shift == 0 else pltpu.roll(ssum, shift, 1)
            rm = smax if shift == 0 else pltpu.roll(smax, shift, 1)
            if oj > 0:                                   # only the binding bound is checked
                ok = col < (W - oj)
            elif oj < 0:
                ok = col >= (-oj)
            else:
                ok = None
            if ok is not None:
                rs = jnp.where(ok, rs, 0.0)
                rm = jnp.where(ok, rm, 0.0)
            cols.append((rs, rm))

        acc = jnp.full((TN, HW), b_ref[0], dtype=jnp.float32)
        for di in range(KS):
            oi = di - pad
            inner = None
            for dj in range(KS):
                rs, rm = cols[dj]
                t = w_ref[di * KS + dj] * rs + w_ref[KS * KS + di * KS + dj] * rm
                inner = t if inner is None else inner + t
            shift = (-(oi * W)) % HW
            if shift != 0:
                inner = pltpu.roll(inner, shift, 1)      # row roll (multiple of W)
            if oi > 0:
                inner = jnp.where(row < (H - oi), inner, 0.0)
            elif oi < 0:
                inner = jnp.where(row >= (-oi), inner, 0.0)
            acc = acc + inner

        o_ref[:, 0, :] = jax.nn.sigmoid(acc).astype(o_ref.dtype)


def _tpu_vmem_info():
    """(vmem_limit_bytes, two_tensorcores) — generation-aware, with a safe fallback."""
    vmem_phys = 64 << 20                      # conservative default if query fails
    try:
        vmem_phys = int(pltpu.get_tpu_info().vmem_capacity_bytes)
    except Exception:
        pass
    if vmem_phys >= (100 << 20):              # v5e / v6e class: 128 MiB physical VMEM
        return 96 << 20, False
    # v7x class: 64 MiB physical VMEM, 2 TensorCores per chip
    return 44 << 20, True


def _step_bytes(tn, tc, HW, x_isz, o_isz):
    """Estimated VMEM working set of one grid step."""
    x_blk = 2 * tn * tc * HW * x_isz          # double-buffered x block
    o_blk = 2 * tn * 1 * HW * o_isz           # double-buffered output block
    scratch = 2 * tn * HW * 4                 # channel sum / max accumulators
    temps = 20 * tn * HW * 4                  # live f32 temporaries in the factored conv
    rc = 2 * 2 * HW * 4                       # row/col index map
    return x_blk + o_blk + scratch + temps + rc


def _divisors_desc(n):
    return [d for d in range(n, 0, -1) if n % d == 0]


def _choose_tiles(N, C, HW, x_isz, o_isz, budget, two_cores):
    """Pick (tn, tc) batch-chunk / channel-chunk sizes against the VMEM budget."""
    sub = max(1, 32 // max(1, x_isz))         # sublane multiple: 8 f32 / 16 bf16 / 32 i8

    # Channel-chunk candidates: prefer no chunking when C is modest; for very
    # large C prefer chunking so the unrolled reduction stays small.
    chunked = [d for d in _divisors_desc(C) if d != C and d % sub == 0 and d <= 128]
    tc_cands = ([C] + chunked) if C <= 256 else (chunked + [C])

    def fits(tn, tc):
        return _step_bytes(tn, tc, HW, x_isz, o_isz) <= budget

    for tc in tc_cands:
        tn_ok = [d for d in _divisors_desc(N) if fits(d, tc)]
        if not tn_ok:
            continue
        if two_cores and N > 1:
            # v7x only: keep >= 2 batch grid steps so both TensorCores get work,
            # and prefer an even step count so neither core idles on a tail step.
            clamped = [d for d in tn_ok if d <= (N + 1) // 2] or tn_ok
            even = [d for d in clamped if (N // d) % 2 == 0]
            return (even[0] if even else clamped[0]), tc
        return tn_ok[0], tc

    # Nothing fits the budget: smallest legal block, let the compiler try.
    # TODO(synk): add a spatial (H*W) chunking axis for pathologically large single images.
    tc_fb = min(d for d in _divisors_desc(C) if d == C or d % sub == 0)
    return 1, tc_fb


def spatial_attention(x, weight, bias):
    """x: (N, C, H, W); weight: (1, 2, K, K) OIHW; bias: (1,)."""
    N, C, H, W = x.shape
    HW = H * W
    KS = weight.shape[-1]

    # Fold 1/C into the avg-channel taps: the kernel feeds the channel SUM.
    scale = jnp.array([1.0 / C, 1.0], jnp.float32).reshape(1, 2, 1, 1)
    w_flat = (weight.astype(jnp.float32) * scale).reshape(-1)        # (2*KS*KS,)
    b = bias.astype(jnp.float32).reshape(1)

    # Grid-invariant row/col index of every flattened pixel (keeps vector int
    # div/mod out of the kernel).
    row_idx = jnp.repeat(jnp.arange(H, dtype=jnp.int32), W)
    col_idx = jnp.tile(jnp.arange(W, dtype=jnp.int32), H)
    rc = jnp.stack([row_idx, col_idx], axis=0)                       # (2, HW)

    x3 = x.reshape(N, C, HW)          # lane-dense view (free reshape of NCHW)

    vmem_limit, two_cores = _tpu_vmem_info()
    tn, tc = _choose_tiles(N, C, HW, x.dtype.itemsize, x.dtype.itemsize,
                           int(vmem_limit * 0.9), two_cores)
    grid = (N // tn, C // tc)         # channel (reduction) axis iterates fastest

    kernel = functools.partial(_sa_kernel, H=H, W=W, KS=KS)

    out = pl.pallas_call(
        kernel,
        out_shape=jax.ShapeDtypeStruct((N, 1, HW), x.dtype),
        grid=grid,
        in_specs=[
            pl.BlockSpec(memory_space=pltpu.SMEM),                    # conv taps
            pl.BlockSpec(memory_space=pltpu.SMEM),                    # bias
            pl.BlockSpec((2, HW), lambda n, c: (0, 0)),               # row/col map
            # On v5e, if the trace shows exposed DMA between steps, add
            # pipeline_mode=pl.Buffered(3) to this spec.
            pl.BlockSpec((tn, tc, HW), lambda n, c: (n, c, 0)),       # x chunk
        ],
        out_specs=pl.BlockSpec((tn, 1, HW), lambda n, c: (n, 0, 0)),
        scratch_shapes=[pltpu.VMEM((tn, HW), jnp.float32),            # channel sum
                        pltpu.VMEM((tn, HW), jnp.float32)],           # channel max
        compiler_params=pltpu.CompilerParams(
            dimension_semantics=("parallel", "arbitrary"),
            vmem_limit_bytes=int(vmem_limit)),
    )(w_flat, b, rc, x3)
    return out.reshape(N, 1, H, W)


def ref_spatial_attention(x, weight, bias):
    """Pure-JAX reference matching torch semantics."""
    pad = weight.shape[-1] // 2
    avg = jnp.mean(x, axis=1, keepdims=True)
    mx = jnp.max(x, axis=1, keepdims=True)
    y = jnp.concatenate([avg, mx], axis=1)
    y = jax.lax.conv_general_dilated(
        y, weight, window_strides=(1, 1),
        padding=((pad, pad), (pad, pad)),
        dimension_numbers=("NCHW", "OIHW", "NCHW"))
    return jax.nn.sigmoid(y + bias.reshape(1, 1, 1, 1))


if __name__ == "__main__":
    N, C, H, W = 2, 4, 16, 16
    key = jax.random.PRNGKey(0)
    k_x, k_w, k_b = jax.random.split(key, 3)

    x = jax.random.normal(k_x, (N, C, H, W), dtype=jnp.float32)

    # Deterministic conv params (PyTorch-style uniform fan-in init, synthetic).
    fan_in = 2 * K * K
    bound = 1.0 / (fan_in ** 0.5)
    weight = jax.random.uniform(k_w, (1, 2, K, K), minval=-bound, maxval=bound,
                                dtype=jnp.float32)
    bias = jax.random.uniform(k_b, (1,), minval=-bound, maxval=bound,
                              dtype=jnp.float32)

    out = spatial_attention(x, weight, bias)
    jax.block_until_ready(out)

    ref = ref_spatial_attention(x, weight, bias)
    assert out.shape == (N, 1, H, W), out.shape
    assert jnp.allclose(out, ref, atol=1e-5, rtol=1e-5), \
        float(jnp.max(jnp.abs(out - ref)))
    print("KERNEL_OK")
</pallas_src>

<mosaic_0001>
module attributes {stable_mosaic.version = 11 : i64} {
  func.func @_sa_kernel(%arg0: i32, %arg1: i32, %arg2: memref<98xf32, #tpu.memory_space<smem>>, %arg3: memref<1xf32, #tpu.memory_space<smem>>, %arg4: memref<2x256xi32, #tpu.memory_space<vmem>>, %arg5: memref<1x4x256xf32, #tpu.memory_space<vmem>>, %arg6: memref<1x1x256xf32, #tpu.memory_space<vmem>>, %arg7: memref<1x256xf32, #tpu.memory_space<vmem>>, %arg8: memref<1x256xf32, #tpu.memory_space<vmem>>) attributes {dimension_semantics = [#tpu.dimension_semantics<parallel>, #tpu.dimension_semantics<arbitrary>], iteration_bounds = array<i64: 2, 1>, scalar_prefetch = 0 : i64, scratch_operands = 2 : i64, tpu.core_type = #tpu.core_type<tc>, window_params = [{transform_indices = @transform_0, window_bounds = array<i64: 98>}, {transform_indices = @transform_1, window_bounds = array<i64: 1>}, {pipeline_mode = #tpu.pipeline_mode<synchronous>, transform_indices = @transform_2, window_bounds = array<i64: 2, 256>}, {transform_indices = @transform_3, window_bounds = array<i64: 1, 4, 256>}, {transform_indices = @transform_4, window_bounds = array<i64: 1, 1, 256>}]} {
    %c0 = arith.constant 0 : index
    %c0_0 = arith.constant 0 : index
    %c0_1 = arith.constant 0 : index
    %0 = vector.load %arg5[%c0, %c0_0, %c0_1] : memref<1x4x256xf32, #tpu.memory_space<vmem>>, vector<1x1x256xf32>
    %1 = vector.shape_cast %0 : vector<1x1x256xf32> to vector<1x256xf32>
    %c0_2 = arith.constant 0 : index
    %c1 = arith.constant 1 : index
    %c0_3 = arith.constant 0 : index
    %2 = vector.load %arg5[%c0_2, %c1, %c0_3] : memref<1x4x256xf32, #tpu.memory_space<vmem>>, vector<1x1x256xf32>
    %3 = vector.shape_cast %2 : vector<1x1x256xf32> to vector<1x256xf32>
    %c0_4 = arith.constant 0 : index
    %c2 = arith.constant 2 : index
    %c0_5 = arith.constant 0 : index
    %4 = vector.load %arg5[%c0_4, %c2, %c0_5] : memref<1x4x256xf32, #tpu.memory_space<vmem>>, vector<1x1x256xf32>
    %5 = vector.shape_cast %4 : vector<1x1x256xf32> to vector<1x256xf32>
    %c0_6 = arith.constant 0 : index
    %c3 = arith.constant 3 : index
    %c0_7 = arith.constant 0 : index
    %6 = vector.load %arg5[%c0_6, %c3, %c0_7] : memref<1x4x256xf32, #tpu.memory_space<vmem>>, vector<1x1x256xf32>
    %7 = vector.shape_cast %6 : vector<1x1x256xf32> to vector<1x256xf32>
    %8 = arith.addf %1, %3 : vector<1x256xf32>
    %9 = arith.addf %5, %7 : vector<1x256xf32>
    %10 = arith.maximumf %1, %3 : vector<1x256xf32>
    %11 = arith.maximumf %5, %7 : vector<1x256xf32>
    %12 = arith.addf %8, %9 : vector<1x256xf32>
    %13 = arith.maximumf %10, %11 : vector<1x256xf32>
    %c0_i32 = arith.constant 0 : i32
    %14 = arith.cmpi eq, %arg1, %c0_i32 : i32
    %15 = arith.extui %14 : i1 to i32
    %c0_i32_8 = arith.constant 0 : i32
    %16 = arith.cmpi ne, %15, %c0_i32_8 : i32
    scf.if %16 {
      %c0_13 = arith.constant 0 : index
      %c0_14 = arith.constant 0 : index
      %23 = vector.load %arg7[%c0_13, %c0_14] : memref<1x256xf32, #tpu.memory_space<vmem>>, vector<1x256xf32>
      tpu.vector_store %arg7[%c0_13, %c0_14], %12 {strides = array<i32>} : memref<1x256xf32, #tpu.memory_space<vmem>>, vector<1x256xf32>,
      %c0_15 = arith.constant 0 : index
      %c0_16 = arith.constant 0 : index
      %24 = vector.load %arg8[%c0_15, %c0_16] : memref<1x256xf32, #tpu.memory_space<vmem>>, vector<1x256xf32>
      tpu.vector_store %arg8[%c0_15, %c0_16], %13 {strides = array<i32>} : memref<1x256xf32, #tpu.memory_space<vmem>>, vector<1x256xf32>,
    } else {
    }
    %c0_i32_9 = arith.constant 0 : i32
    %17 = arith.cmpi ne, %arg1, %c0_i32_9 : i32
    %18 = arith.extui %17 : i1 to i32
    %c0_i32_10 = arith.constant 0 : i32
    %19 = arith.cmpi ne, %18, %c0_i32_10 : i32
    scf.if %19 {
      %c0_13 = arith.constant 0 : index
      %c0_14 = arith.constant 0 : index
      %23 = vector.load %arg7[%c0_13, %c0_14] : memref<1x256xf32, #tpu.memory_space<vmem>>, vector<1x256xf32>
      %24 = arith.addf %23, %12 : vector<1x256xf32>
      %c0_15 = arith.constant 0 : index
      %c0_16 = arith.constant 0 : index
      %25 = vector.load %arg7[%c0_15, %c0_16] : memref<1x256xf32, #tpu.memory_space<vmem>>, vector<1x256xf32>
      tpu.vector_store %arg7[%c0_15, %c0_16], %24 {strides = array<i32>} : memref<1x256xf32, #tpu.memory_space<vmem>>, vector<1x256xf32>,
      %c0_17 = arith.constant 0 : index
      %c0_18 = arith.constant 0 : index
      %26 = vector.load %arg8[%c0_17, %c0_18] : memref<1x256xf32, #tpu.memory_space<vmem>>, vector<1x256xf32>
      %27 = arith.maximumf %26, %13 : vector<1x256xf32>
      %c0_19 = arith.constant 0 : index
      %c0_20 = arith.constant 0 : index
      %28 = vector.load %arg8[%c0_19, %c0_20] : memref<1x256xf32, #tpu.memory_space<vmem>>, vector<1x256xf32>
      tpu.vector_store %arg8[%c0_19, %c0_20], %27 {strides = array<i32>} : memref<1x256xf32, #tpu.memory_space<vmem>>, vector<1x256xf32>,
    } else {
    }
    %c0_i32_11 = arith.constant 0 : i32
    %20 = arith.cmpi eq, %arg1, %c0_i32_11 : i32
    %21 = arith.extui %20 : i1 to i32
    %c0_i32_12 = arith.constant 0 : i32
    %22 = arith.cmpi ne, %21, %c0_i32_12 : i32
    scf.if %22 {
      %c0_13 = arith.constant 0 : index
      %c0_14 = arith.constant 0 : index
      %23 = vector.load %arg7[%c0_13, %c0_14] : memref<1x256xf32, #tpu.memory_space<vmem>>, vector<1x256xf32>
      %c0_15 = arith.constant 0 : index
      %c0_16 = arith.constant 0 : index
      %24 = vector.load %arg8[%c0_15, %c0_16] : memref<1x256xf32, #tpu.memory_space<vmem>>, vector<1x256xf32>
      %c0_17 = arith.constant 0 : index
      %c0_18 = arith.constant 0 : index
      %25 = vector.load %arg4[%c0_17, %c0_18] : memref<2x256xi32, #tpu.memory_space<vmem>>, vector<1x256xi32>
      %c1_19 = arith.constant 1 : index
      %c0_20 = arith.constant 0 : index
      %26 = vector.load %arg4[%c1_19, %c0_20] : memref<2x256xi32, #tpu.memory_space<vmem>>, vector<1x256xi32>
      %c3_i32 = arith.constant 3 : i32
      %27 = tpu.dynamic_rotate %23 by %c3_i32 dim 1 : vector<1x256xf32>, i32 -> vector<1x256xf32>
      %c3_i32_21 = arith.constant 3 : i32
      %28 = tpu.dynamic_rotate %24 by %c3_i32_21 dim 1 : vector<1x256xf32>, i32 -> vector<1x256xf32>
      %c3_i32_22 = arith.constant 3 : i32
      %29 = vector.broadcast %c3_i32_22 : i32 to vector<1x256xi32>
      %30 = arith.cmpi sge, %26, %29 : vector<1x256xi32>
      %cst = arith.constant 0.000000e+00 : f32
      %31 = vector.broadcast %cst : f32 to vector<1x256xf32>
      %32 = arith.select %30, %27, %31 : vector<1x256xi1>, vector<1x256xf32>
      %cst_23 = arith.constant 0.000000e+00 : f32
      %33 = vector.broadcast %cst_23 : f32 to vector<1x256xf32>
      %34 = arith.select %30, %28, %33 : vector<1x256xi1>, vector<1x256xf32>
      %c2_i32 = arith.constant 2 : i32
      %35 = tpu.dynamic_rotate %23 by %c2_i32 dim 1 : vector<1x256xf32>, i32 -> vector<1x256xf32>
      %c2_i32_24 = arith.constant 2 : i32
      %36 = tpu.dynamic_rotate %24 by %c2_i32_24 dim 1 : vector<1x256xf32>, i32 -> vector<1x256xf32>
      %c2_i32_25 = arith.constant 2 : i32
      %37 = vector.broadcast %c2_i32_25 : i32 to vector<1x256xi32>
      %38 = arith.cmpi sge, %26, %37 : vector<1x256xi32>
      %cst_26 = arith.constant 0.000000e+00 : f32
      %39 = vector.broadcast %cst_26 : f32 to vector<1x256xf32>
      %40 = arith.select %38, %35, %39 : vector<1x256xi1>, vector<1x256xf32>
      %cst_27 = arith.constant 0.000000e+00 : f32
      %41 = vector.broadcast %cst_27 : f32 to vector<1x256xf32>
      %42 = arith.select %38, %36, %41 : vector<1x256xi1>, vector<1x256xf32>
      %c1_i32 = arith.constant 1 : i32
      %43 = tpu.dynamic_rotate %23 by %c1_i32 dim 1 : vector<1x256xf32>, i32 -> vector<1x256xf32>
      %c1_i32_28 = arith.constant 1 : i32
      %44 = tpu.dynamic_rotate %24 by %c1_i32_28 dim 1 : vector<1x256xf32>, i32 -> vector<1x256xf32>
      %c1_i32_29 = arith.constant 1 : i32
      %45 = vector.broadcast %c1_i32_29 : i32 to vector<1x256xi32>
      %46 = arith.cmpi sge, %26, %45 : vector<1x256xi32>
      %cst_30 = arith.constant 0.000000e+00 : f32
      %47 = vector.broadcast %cst_30 : f32 to vector<1x256xf32>
      %48 = arith.select %46, %43, %47 : vector<1x256xi1>, vector<1x256xf32>
      %cst_31 = arith.constant 0.000000e+00 : f32
      %49 = vector.broadcast %cst_31 : f32 to vector<1x256xf32>
      %50 = arith.select %46, %44, %49 : vector<1x256xi1>, vector<1x256xf32>
      %c255_i32 = arith.constant 255 : i32
      %51 = tpu.dynamic_rotate %23 by %c255_i32 dim 1 : vector<1x256xf32>, i32 -> vector<1x256xf32>
      %c255_i32_32 = arith.constant 255 : i32
      %52 = tpu.dynamic_rotate %24 by %c255_i32_32 dim 1 : vector<1x256xf32>, i32 -> vector<1x256xf32>
      %c15_i32 = arith.constant 15 : i32
      %53 = vector.broadcast %c15_i32 : i32 to vector<1x256xi32>
      %54 = arith.cmpi slt, %26, %53 : vector<1x256xi32>
      %cst_33 = arith.constant 0.000000e+00 : f32
      %55 = vector.broadcast %cst_33 : f32 to vector<1x256xf32>
      %56 = arith.select %54, %51, %55 : vector<1x256xi1>, vector<1x256xf32>
      %cst_34 = arith.constant 0.000000e+00 : f32
      %57 = vector.broadcast %cst_34 : f32 to vector<1x256xf32>
      %58 = arith.select %54, %52, %57 : vector<1x256xi1>, vector<1x256xf32>
      %c254_i32 = arith.constant 254 : i32
      %59 = tpu.dynamic_rotate %23 by %c254_i32 dim 1 : vector<1x256xf32>, i32 -> vector<1x256xf32>
      %c254_i32_35 = arith.constant 254 : i32
      %60 = tpu.dynamic_rotate %24 by %c254_i32_35 dim 1 : vector<1x256xf32>, i32 -> vector<1x256xf32>
      %c14_i32 = arith.constant 14 : i32
      %61 = vector.broadcast %c14_i32 : i32 to vector<1x256xi32>
      %62 = arith.cmpi slt, %26, %61 : vector<1x256xi32>
      %cst_36 = arith.constant 0.000000e+00 : f32
      %63 = vector.broadcast %cst_36 : f32 to vector<1x256xf32>
      %64 = arith.select %62, %59, %63 : vector<1x256xi1>, vector<1x256xf32>
      %cst_37 = arith.constant 0.000000e+00 : f32
      %65 = vector.broadcast %cst_37 : f32 to vector<1x256xf32>
      %66 = arith.select %62, %60, %65 : vector<1x256xi1>, vector<1x256xf32>
      %c253_i32 = arith.constant 253 : i32
      %67 = tpu.dynamic_rotate %23 by %c253_i32 dim 1 : vector<1x256xf32>, i32 -> vector<1x256xf32>
      %c253_i32_38 = arith.constant 253 : i32
      %68 = tpu.dynamic_rotate %24 by %c253_i32_38 dim 1 : vector<1x256xf32>, i32 -> vector<1x256xf32>
      %c13_i32 = arith.constant 13 : i32
      %69 = vector.broadcast %c13_i32 : i32 to vector<1x256xi32>
      %70 = arith.cmpi slt, %26, %69 : vector<1x256xi32>
      %cst_39 = arith.constant 0.000000e+00 : f32
      %71 = vector.broadcast %cst_39 : f32 to vector<1x256xf32>
      %72 = arith.select %70, %67, %71 : vector<1x256xi1>, vector<1x256xf32>
      %cst_40 = arith.constant 0.000000e+00 : f32
      %73 = vector.broadcast %cst_40 : f32 to vector<1x256xf32>
      %74 = arith.select %70, %68, %73 : vector<1x256xi1>, vector<1x256xf32>
      %c0_41 = arith.constant 0 : index
      %75 = memref.load %arg3[%c0_41] : memref<1xf32, #tpu.memory_space<smem>>
      %76 = vector.broadcast %75 : f32 to vector<1x256xf32>
      %c0_42 = arith.constant 0 : index
      %77 = memref.load %arg2[%c0_42] : memref<98xf32, #tpu.memory_space<smem>>
      %78 = vector.broadcast %77 : f32 to vector<1x256xf32>
      %79 = arith.mulf %78, %32 : vector<1x256xf32>
      %c49 = arith.constant 49 : index
      %80 = memref.load %arg2[%c49] : memref<98xf32, #tpu.memory_space<smem>>
      %81 = vector.broadcast %80 : f32 to vector<1x256xf32>
      %82 = arith.mulf %81, %34 : vector<1x256xf32>
      %83 = arith.addf %79, %82 : vector<1x256xf32>
      %c1_43 = arith.constant 1 : index
      %84 = memref.load %arg2[%c1_43] : memref<98xf32, #tpu.memory_space<smem>>
      %85 = vector.broadcast %84 : f32 to vector<1x256xf32>
      %86 = arith.mulf %85, %40 : vector<1x256xf32>
      %c50 = arith.constant 50 : index
      %87 = memref.load %arg2[%c50] : memref<98xf32, #tpu.memory_space<smem>>
      %88 = vector.broadcast %87 : f32 to vector<1x256xf32>
      %89 = arith.mulf %88, %42 : vector<1x256xf32>
      %90 = arith.addf %86, %89 : vector<1x256xf32>
      %91 = arith.addf %83, %90 : vector<1x256xf32>
      %c2_44 = arith.constant 2 : index
      %92 = memref.load %arg2[%c2_44] : memref<98xf32, #tpu.memory_space<smem>>
      %93 = vector.broadcast %92 : f32 to vector<1x256xf32>
      %94 = arith.mulf %93, %48 : vector<1x256xf32>
      %c51 = arith.constant 51 : index
      %95 = memref.load %arg2[%c51] : memref<98xf32, #tpu.memory_space<smem>>
      %96 = vector.broadcast %95 : f32 to vector<1x256xf32>
      %97 = arith.mulf %96, %50 : vector<1x256xf32>
      %98 = arith.addf %94, %97 : vector<1x256xf32>
      %99 = arith.addf %91, %98 : vector<1x256xf32>
      %c3_45 = arith.constant 3 : index
      %100 = memref.load %arg2[%c3_45] : memref<98xf32, #tpu.memory_space<smem>>
      %101 = vector.broadcast %100 : f32 to vector<1x256xf32>
      %102 = arith.mulf %101, %23 : vector<1x256xf32>
      %c52 = arith.constant 52 : index
      %103 = memref.load %arg2[%c52] : memref<98xf32, #tpu.memory_space<smem>>
      %104 = vector.broadcast %103 : f32 to vector<1x256xf32>
      %105 = arith.mulf %104, %24 : vector<1x256xf32>
      %106 = arith.addf %102, %105 : vector<1x256xf32>
      %107 = arith.addf %99, %106 : vector<1x256xf32>
      %c4 = arith.constant 4 : index
      %108 = memref.load %arg2[%c4] : memref<98xf32, #tpu.memory_space<smem>>
      %109 = vector.broadcast %108 : f32 to vector<1x256xf32>
      %110 = arith.mulf %109, %56 : vector<1x256xf32>
      %c53 = arith.constant 53 : index
      %111 = memref.load %arg2[%c53] : memref<98xf32, #tpu.memory_space<smem>>
      %112 = vector.broadcast %111 : f32 to vector<1x256xf32>
      %113 = arith.mulf %112, %58 : vector<1x256xf32>
      %114 = arith.addf %110, %113 : vector<1x256xf32>
      %115 = arith.addf %107, %114 : vector<1x256xf32>
      %c5 = arith.constant 5 : index
      %116 = memref.load %arg2[%c5] : memref<98xf32, #tpu.memory_space<smem>>
      %117 = vector.broadcast %116 : f32 to vector<1x256xf32>
      %118 = arith.mulf %117, %64 : vector<1x256xf32>
      %c54 = arith.constant 54 : index
      %119 = memref.load %arg2[%c54] : memref<98xf32, #tpu.memory_space<smem>>
      %120 = vector.broadcast %119 : f32 to vector<1x256xf32>
      %121 = arith.mulf %120, %66 : vector<1x256xf32>
      %122 = arith.addf %118, %121 : vector<1x256xf32>
      %123 = arith.addf %115, %122 : vector<1x256xf32>
      %c6 = arith.constant 6 : index
      %124 = memref.load %arg2[%c6] : memref<98xf32, #tpu.memory_space<smem>>
      %125 = vector.broadcast %124 : f32 to vector<1x256xf32>
      %126 = arith.mulf %125, %72 : vector<1x256xf32>
      %c55 = arith.constant 55 : index
      %127 = memref.load %arg2[%c55] : memref<98xf32, #tpu.memory_space<smem>>
      %128 = vector.broadcast %127 : f32 to vector<1x256xf32>
      %129 = arith.mulf %128, %74 : vector<1x256xf32>
      %130 = arith.addf %126, %129 : vector<1x256xf32>
      %131 = arith.addf %123, %130 : vector<1x256xf32>
      %c48_i32 = arith.constant 48 : i32
      %132 = tpu.dynamic_rotate %131 by %c48_i32 dim 1 : vector<1x256xf32>, i32 -> vector<1x256xf32>
      %c3_i32_46 = arith.constant 3 : i32
      %133 = vector.broadcast %c3_i32_46 : i32 to vector<1x256xi32>
      %134 = arith.cmpi sge, %25, %133 : vector<1x256xi32>
      %cst_47 = arith.constant 0.000000e+00 : f32
      %135 = vector.broadcast %cst_47 : f32 to vector<1x256xf32>
      %136 = arith.select %134, %132, %135 : vector<1x256xi1>, vector<1x256xf32>
      %137 = arith.addf %76, %136 : vector<1x256xf32>
      %c7 = arith.constant 7 : index
      %138 = memref.load %arg2[%c7] : memref<98xf32, #tpu.memory_space<smem>>
      %139 = vector.broadcast %138 : f32 to vector<1x256xf32>
      %140 = arith.mulf %139, %32 : vector<1x256xf32>
      %c56 = arith.constant 56 : index
      %141 = memref.load %arg2[%c56] : memref<98xf32, #tpu.memory_space<smem>>
      %142 = vector.broadcast %141 : f32 to vector<1x256xf32>
      %143 = arith.mulf %142, %34 : vector<1x256xf32>
      %144 = arith.addf %140, %143 : vector<1x256xf32>
      %c8 = arith.constant 8 : index
      %145 = memref.load %arg2[%c8] : memref<98xf32, #tpu.memory_space<smem>>
      %146 = vector.broadcast %145 : f32 to vector<1x256xf32>
      %147 = arith.mulf %146, %40 : vector<1x256xf32>
      %c57 = arith.constant 57 : index
      %148 = memref.load %arg2[%c57] : memref<98xf32, #tpu.memory_space<smem>>
      %149 = vector.broadcast %148 : f32 to vector<1x256xf32>
      %150 = arith.mulf %149, %42 : vector<1x256xf32>
      %151 = arith.addf %147, %150 : vector<1x256xf32>
      %152 = arith.addf %144, %151 : vector<1x256xf32>
      %c9 = arith.constant 9 : index
      %153 = memref.load %arg2[%c9] : memref<98xf32, #tpu.memory_space<smem>>
      %154 = vector.broadcast %153 : f32 to vector<1x256xf32>
      %155 = arith.mulf %154, %48 : vector<1x256xf32>
      %c58 = arith.constant 58 : index
      %156 = memref.load %arg2[%c58] : memref<98xf32, #tpu.memory_space<smem>>
      %157 = vector.broadcast %156 : f32 to vector<1x256xf32>
      %158 = arith.mulf %157, %50 : vector<1x256xf32>
      %159 = arith.addf %155, %158 : vector<1x256xf32>
      %160 = arith.addf %152, %159 : vector<1x256xf32>
      %c10 = arith.constant 10 : index
      %161 = memref.load %arg2[%c10] : memref<98xf32, #tpu.memory_space<smem>>
      %162 = vector.broadcast %161 : f32 to vector<1x256xf32>
      %163 = arith.mulf %162, %23 : vector<1x256xf32>
      %c59 = arith.constant 59 : index
      %164 = memref.load %arg2[%c59] : memref<98xf32, #tpu.memory_space<smem>>
      %165 = vector.broadcast %164 : f32 to vector<1x256xf32>
      %166 = arith.mulf %165, %24 : vector<1x256xf32>
      %167 = arith.addf %163, %166 : vector<1x256xf32>
      %168 = arith.addf %160, %167 : vector<1x256xf32>
      %c11 = arith.constant 11 : index
      %169 = memref.load %arg2[%c11] : memref<98xf32, #tpu.memory_space<smem>>
      %170 = vector.broadcast %169 : f32 to vector<1x256xf32>
      %171 = arith.mulf %170, %56 : vector<1x256xf32>
      %c60 = arith.constant 60 : index
      %172 = memref.load %arg2[%c60] : memref<98xf32, #tpu.memory_space<smem>>
      %173 = vector.broadcast %172 : f32 to vector<1x256xf32>
      %174 = arith.mulf %173, %58 : vector<1x256xf32>
      %175 = arith.addf %171, %174 : vector<1x256xf32>
      %176 = arith.addf %168, %175 : vector<1x256xf32>
      %c12 = arith.constant 12 : index
      %177 = memref.load %arg2[%c12] : memref<98xf32, #tpu.memory_space<smem>>
      %178 = vector.broadcast %177 : f32 to vector<1x256xf32>
      %179 = arith.mulf %178, %64 : vector<1x256xf32>
      %c61 = arith.constant 61 : index
      %180 = memref.load %arg2[%c61] : memref<98xf32, #tpu.memory_space<smem>>
      %181 = vector.broadcast %180 : f32 to vector<1x256xf32>
      %182 = arith.mulf %181, %66 : vector<1x256xf32>
      %183 = arith.addf %179, %182 : vector<1x256xf32>
      %184 = arith.addf %176, %183 : vector<1x256xf32>
      %c13 = arith.constant 13 : index
      %185 = memref.load %arg2[%c13] : memref<98xf32, #tpu.memory_space<smem>>
      %186 = vector.broadcast %185 : f32 to vector<1x256xf32>
      %187 = arith.mulf %186, %72 : vector<1x256xf32>
      %c62 = arith.constant 62 : index
      %188 = memref.load %arg2[%c62] : memref<98xf32, #tpu.memory_space<smem>>
      %189 = vector.broadcast %188 : f32 to vector<1x256xf32>
      %190 = arith.mulf %189, %74 : vector<1x256xf32>
      %191 = arith.addf %187, %190 : vector<1x256xf32>
      %192 = arith.addf %184, %191 : vector<1x256xf32>
      %c32_i32 = arith.constant 32 : i32
      %193 = tpu.dynamic_rotate %192 by %c32_i32 dim 1 : vector<1x256xf32>, i32 -> vector<1x256xf32>
      %c2_i32_48 = arith.constant 2 : i32
      %194 = vector.broadcast %c2_i32_48 : i32 to vector<1x256xi32>
      %195 = arith.cmpi sge, %25, %194 : vector<1x256xi32>
      %cst_49 = arith.constant 0.000000e+00 : f32
      %196 = vector.broadcast %cst_49 : f32 to vector<1x256xf32>
      %197 = arith.select %195, %193, %196 : vector<1x256xi1>, vector<1x256xf32>
      %198 = arith.addf %137, %197 : vector<1x256xf32>
      %c14 = arith.constant 14 : index
      %199 = memref.load %arg2[%c14] : memref<98xf32, #tpu.memory_space<smem>>
      %200 = vector.broadcast %199 : f32 to vector<1x256xf32>
      %201 = arith.mulf %200, %32 : vector<1x256xf32>
      %c63 = arith.constant 63 : index
      %202 = memref.load %arg2[%c63] : memref<98xf32, #tpu.memory_space<smem>>
      %203 = vector.broadcast %202 : f32 to vector<1x256xf32>
      %204 = arith.mulf %203, %34 : vector<1x256xf32>
      %205 = arith.addf %201, %204 : vector<1x256xf32>
      %c15 = arith.constant 15 : index
      %206 = memref.load %arg2[%c15] : memref<98xf32, #tpu.memory_space<smem>>
      %207 = vector.broadcast %206 : f32 to vector<1x256xf32>
      %208 = arith.mulf %207, %40 : vector<1x256xf32>
      %c64 = arith.constant 64 : index
      %209 = memref.load %arg2[%c64] : memref<98xf32, #tpu.memory_space<smem>>
      %210 = vector.broadcast %209 : f32 to vector<1x256xf32>
      %211 = arith.mulf %210, %42 : vector<1x256xf32>
      %212 = arith.addf %208, %211 : vector<1x256xf32>
      %213 = arith.addf %205, %212 : vector<1x256xf32>
      %c16 = arith.constant 16 : index
      %214 = memref.load %arg2[%c16] : memref<98xf32, #tpu.memory_space<smem>>
      %215 = vector.broadcast %214 : f32 to vector<1x256xf32>
      %216 = arith.mulf %215, %48 : vector<1x256xf32>
      %c65 = arith.constant 65 : index
      %217 = memref.load %arg2[%c65] : memref<98xf32, #tpu.memory_space<smem>>
      %218 = vector.broadcast %217 : f32 to vector<1x256xf32>
      %219 = arith.mulf %218, %50 : vector<1x256xf32>
      %220 = arith.addf %216, %219 : vector<1x256xf32>
      %221 = arith.addf %213, %220 : vector<1x256xf32>
      %c17 = arith.constant 17 : index
      %222 = memref.load %arg2[%c17] : memref<98xf32, #tpu.memory_space<smem>>
      %223 = vector.broadcast %222 : f32 to vector<1x256xf32>
      %224 = arith.mulf %223, %23 : vector<1x256xf32>
      %c66 = arith.constant 66 : index
      %225 = memref.load %arg2[%c66] : memref<98xf32, #tpu.memory_space<smem>>
      %226 = vector.broadcast %225 : f32 to vector<1x256xf32>
      %227 = arith.mulf %226, %24 : vector<1x256xf32>
      %228 = arith.addf %224, %227 : vector<1x256xf32>
      %229 = arith.addf %221, %228 : vector<1x256xf32>
      %c18 = arith.constant 18 : index
      %230 = memref.load %arg2[%c18] : memref<98xf32, #tpu.memory_space<smem>>
      %231 = vector.broadcast %230 : f32 to vector<1x256xf32>
      %232 = arith.mulf %231, %56 : vector<1x256xf32>
      %c67 = arith.constant 67 : index
      %233 = memref.load %arg2[%c67] : memref<98xf32, #tpu.memory_space<smem>>
      %234 = vector.broadcast %233 : f32 to vector<1x256xf32>
      %235 = arith.mulf %234, %58 : vector<1x256xf32>
      %236 = arith.addf %232, %235 : vector<1x256xf32>
      %237 = arith.addf %229, %236 : vector<1x256xf32>
      %c19 = arith.constant 19 : index
      %238 = memref.load %arg2[%c19] : memref<98xf32, #tpu.memory_space<smem>>
      %239 = vector.broadcast %238 : f32 to vector<1x256xf32>
      %240 = arith.mulf %239, %64 : vector<1x256xf32>
      %c68 = arith.constant 68 : index
      %241 = memref.load %arg2[%c68] : memref<98xf32, #tpu.memory_space<smem>>
      %242 = vector.broadcast %241 : f32 to vector<1x256xf32>
      %243 = arith.mulf %242, %66 : vector<1x256xf32>
      %244 = arith.addf %240, %243 : vector<1x256xf32>
      %245 = arith.addf %237, %244 : vector<1x256xf32>
      %c20 = arith.constant 20 : index
      %246 = memref.load %arg2[%c20] : memref<98xf32, #tpu.memory_space<smem>>
      %247 = vector.broadcast %246 : f32 to vector<1x256xf32>
      %248 = arith.mulf %247, %72 : vector<1x256xf32>
      %c69 = arith.constant 69 : index
      %249 = memref.load %arg2[%c69] : memref<98xf32, #tpu.memory_space<smem>>
      %250 = vector.broadcast %249 : f32 to vector<1x256xf32>
      %251 = arith.mulf %250, %74 : vector<1x256xf32>
      %252 = arith.addf %248, %251 : vector<1x256xf32>
      %253 = arith.addf %245, %252 : vector<1x256xf32>
      %c16_i32 = arith.constant 16 : i32
      %254 = tpu.dynamic_rotate %253 by %c16_i32 dim 1 : vector<1x256xf32>, i32 -> vector<1x256xf32>
      %c1_i32_50 = arith.constant 1 : i32
      %255 = vector.broadcast %c1_i32_50 : i32 to vector<1x256xi32>
      %256 = arith.cmpi sge, %25, %255 : vector<1x256xi32>
      %cst_51 = arith.constant 0.000000e+00 : f32
      %257 = vector.broadcast %cst_51 : f32 to vector<1x256xf32>
      %258 = arith.select %256, %254, %257 : vector<1x256xi1>, vector<1x256xf32>
      %259 = arith.addf %198, %258 : vector<1x256xf32>
      %c21 = arith.constant 21 : index
      %260 = memref.load %arg2[%c21] : memref<98xf32, #tpu.memory_space<smem>>
      %261 = vector.broadcast %260 : f32 to vector<1x256xf32>
      %262 = arith.mulf %261, %32 : vector<1x256xf32>
      %c70 = arith.constant 70 : index
      %263 = memref.load %arg2[%c70] : memref<98xf32, #tpu.memory_space<smem>>
      %264 = vector.broadcast %263 : f32 to vector<1x256xf32>
      %265 = arith.mulf %264, %34 : vector<1x256xf32>
      %266 = arith.addf %262, %265 : vector<1x256xf32>
      %c22 = arith.constant 22 : index
      %267 = memref.load %arg2[%c22] : memref<98xf32, #tpu.memory_space<smem>>
      %268 = vector.broadcast %267 : f32 to vector<1x256xf32>
      %269 = arith.mulf %268, %40 : vector<1x256xf32>
      %c71 = arith.constant 71 : index
      %270 = memref.load %arg2[%c71] : memref<98xf32, #tpu.memory_space<smem>>
      %271 = vector.broadcast %270 : f32 to vector<1x256xf32>
      %272 = arith.mulf %271, %42 : vector<1x256xf32>
      %273 = arith.addf %269, %272 : vector<1x256xf32>
      %274 = arith.addf %266, %273 : vector<1x256xf32>
      %c23 = arith.constant 23 : index
      %275 = memref.load %arg2[%c23] : memref<98xf32, #tpu.memory_space<smem>>
      %276 = vector.broadcast %275 : f32 to vector<1x256xf32>
      %277 = arith.mulf %276, %48 : vector<1x256xf32>
      %c72 = arith.constant 72 : index
      %278 = memref.load %arg2[%c72] : memref<98xf32, #tpu.memory_space<smem>>
      %279 = vector.broadcast %278 : f32 to vector<1x256xf32>
      %280 = arith.mulf %279, %50 : vector<1x256xf32>
      %281 = arith.addf %277, %280 : vector<1x256xf32>
      %282 = arith.addf %274, %281 : vector<1x256xf32>
      %c24 = arith.constant 24 : index
      %283 = memref.load %arg2[%c24] : memref<98xf32, #tpu.memory_space<smem>>
      %284 = vector.broadcast %283 : f32 to vector<1x256xf32>
      %285 = arith.mulf %284, %23 : vector<1x256xf32>
      %c73 = arith.constant 73 : index
      %286 = memref.load %arg2[%c73] : memref<98xf32, #tpu.memory_space<smem>>
      %287 = vector.broadcast %286 : f32 to vector<1x256xf32>
      %288 = arith.mulf %287, %24 : vector<1x256xf32>
      %289 = arith.addf %285, %288 : vector<1x256xf32>
      %290 = arith.addf %282, %289 : vector<1x256xf32>
      %c25 = arith.constant 25 : index
      %291 = memref.load %arg2[%c25] : memref<98xf32, #tpu.memory_space<smem>>
      %292 = vector.broadcast %291 : f32 to vector<1x256xf32>
      %293 = arith.mulf %292, %56 : vector<1x256xf32>
      %c74 = arith.constant 74 : index
      %294 = memref.load %arg2[%c74] : memref<98xf32, #tpu.memory_space<smem>>
      %295 = vector.broadcast %294 : f32 to vector<1x256xf32>
      %296 = arith.mulf %295, %58 : vector<1x256xf32>
      %297 = arith.addf %293, %296 : vector<1x256xf32>
      %298 = arith.addf %290, %297 : vector<1x256xf32>
      %c26 = arith.constant 26 : index
      %299 = memref.load %arg2[%c26] : memref<98xf32, #tpu.memory_space<smem>>
      %300 = vector.broadcast %299 : f32 to vector<1x256xf32>
      %301 = arith.mulf %300, %64 : vector<1x256xf32>
      %c75 = arith.constant 75 : index
      %302 = memref.load %arg2[%c75] : memref<98xf32, #tpu.memory_space<smem>>
      %303 = vector.broadcast %302 : f32 to vector<1x256xf32>
      %304 = arith.mulf %303, %66 : vector<1x256xf32>
      %305 = arith.addf %301, %304 : vector<1x256xf32>
      %306 = arith.addf %298, %305 : vector<1x256xf32>
      %c27 = arith.constant 27 : index
      %307 = memref.load %arg2[%c27] : memref<98xf32, #tpu.memory_space<smem>>
      %308 = vector.broadcast %307 : f32 to vector<1x256xf32>
      %309 = arith.mulf %308, %72 : vector<1x256xf32>
      %c76 = arith.constant 76 : index
      %310 = memref.load %arg2[%c76] : memref<98xf32, #tpu.memory_space<smem>>
      %311 = vector.broadcast %310 : f32 to vector<1x256xf32>
      %312 = arith.mulf %311, %74 : vector<1x256xf32>
      %313 = arith.addf %309, %312 : vector<1x256xf32>
      %314 = arith.addf %306, %313 : vector<1x256xf32>
      %315 = arith.addf %259, %314 : vector<1x256xf32>
      %c28 = arith.constant 28 : index
      %316 = memref.load %arg2[%c28] : memref<98xf32, #tpu.memory_space<smem>>
      %317 = vector.broadcast %316 : f32 to vector<1x256xf32>
      %318 = arith.mulf %317, %32 : vector<1x256xf32>
      %c77 = arith.constant 77 : index
      %319 = memref.load %arg2[%c77] : memref<98xf32, #tpu.memory_space<smem>>
      %320 = vector.broadcast %319 : f32 to vector<1x256xf32>
      %321 = arith.mulf %320, %34 : vector<1x256xf32>
      %322 = arith.addf %318, %321 : vector<1x256xf32>
      %c29 = arith.constant 29 : index
      %323 = memref.load %arg2[%c29] : memref<98xf32, #tpu.memory_space<smem>>
      %324 = vector.broadcast %323 : f32 to vector<1x256xf32>
      %325 = arith.mulf %324, %40 : vector<1x256xf32>
      %c78 = arith.constant 78 : index
      %326 = memref.load %arg2[%c78] : memref<98xf32, #tpu.memory_space<smem>>
      %327 = vector.broadcast %326 : f32 to vector<1x256xf32>
      %328 = arith.mulf %327, %42 : vector<1x256xf32>
      %329 = arith.addf %325, %328 : vector<1x256xf32>
      %330 = arith.addf %322, %329 : vector<1x256xf32>
      %c30 = arith.constant 30 : index
      %331 = memref.load %arg2[%c30] : memref<98xf32, #tpu.memory_space<smem>>
      %332 = vector.broadcast %331 : f32 to vector<1x256xf32>
      %333 = arith.mulf %332, %48 : vector<1x256xf32>
      %c79 = arith.constant 79 : index
      %334 = memref.load %arg2[%c79] : memref<98xf32, #tpu.memory_space<smem>>
      %335 = vector.broadcast %334 : f32 to vector<1x256xf32>
      %336 = arith.mulf %335, %50 : vector<1x256xf32>
      %337 = arith.addf %333, %336 : vector<1x256xf32>
      %338 = arith.addf %330, %337 : vector<1x256xf32>
      %c31 = arith.constant 31 : index
      %339 = memref.load %arg2[%c31] : memref<98xf32, #tpu.memory_space<smem>>
      %340 = vector.broadcast %339 : f32 to vector<1x256xf32>
      %341 = arith.mulf %340, %23 : vector<1x256xf32>
      %c80 = arith.constant 80 : index
      %342 = memref.load %arg2[%c80] : memref<98xf32, #tpu.memory_space<smem>>
      %343 = vector.broadcast %342 : f32 to vector<1x256xf32>
      %344 = arith.mulf %343, %24 : vector<1x256xf32>
      %345 = arith.addf %341, %344 : vector<1x256xf32>
      %346 = arith.addf %338, %345 : vector<1x256xf32>
      %c32 = arith.constant 32 : index
      %347 = memref.load %arg2[%c32] : memref<98xf32, #tpu.memory_space<smem>>
      %348 = vector.broadcast %347 : f32 to vector<1x256xf32>
      %349 = arith.mulf %348, %56 : vector<1x256xf32>
      %c81 = arith.constant 81 : index
      %350 = memref.load %arg2[%c81] : memref<98xf32, #tpu.memory_space<smem>>
      %351 = vector.broadcast %350 : f32 to vector<1x256xf32>
      %352 = arith.mulf %351, %58 : vector<1x256xf32>
      %353 = arith.addf %349, %352 : vector<1x256xf32>
      %354 = arith.addf %346, %353 : vector<1x256xf32>
      %c33 = arith.constant 33 : index
      %355 = memref.load %arg2[%c33] : memref<98xf32, #tpu.memory_space<smem>>
      %356 = vector.broadcast %355 : f32 to vector<1x256xf32>
      %357 = arith.mulf %356, %64 : vector<1x256xf32>
      %c82 = arith.constant 82 : index
      %358 = memref.load %arg2[%c82] : memref<98xf32, #tpu.memory_space<smem>>
      %359 = vector.broadcast %358 : f32 to vector<1x256xf32>
      %360 = arith.mulf %359, %66 : vector<1x256xf32>
      %361 = arith.addf %357, %360 : vector<1x256xf32>
      %362 = arith.addf %354, %361 : vector<1x256xf32>
      %c34 = arith.constant 34 : index
      %363 = memref.load %arg2[%c34] : memref<98xf32, #tpu.memory_space<smem>>
      %364 = vector.broadcast %363 : f32 to vector<1x256xf32>
      %365 = arith.mulf %364, %72 : vector<1x256xf32>
      %c83 = arith.constant 83 : index
      %366 = memref.load %arg2[%c83] : memref<98xf32, #tpu.memory_space<smem>>
      %367 = vector.broadcast %366 : f32 to vector<1x256xf32>
      %368 = arith.mulf %367, %74 : vector<1x256xf32>
      %369 = arith.addf %365, %368 : vector<1x256xf32>
      %370 = arith.addf %362, %369 : vector<1x256xf32>
      %c240_i32 = arith.constant 240 : i32
      %371 = tpu.dynamic_rotate %370 by %c240_i32 dim 1 : vector<1x256xf32>, i32 -> vector<1x256xf32>
      %c15_i32_52 = arith.constant 15 : i32
      %372 = vector.broadcast %c15_i32_52 : i32 to vector<1x256xi32>
      %373 = arith.cmpi slt, %25, %372 : vector<1x256xi32>
      %cst_53 = arith.constant 0.000000e+00 : f32
      %374 = vector.broadcast %cst_53 : f32 to vector<1x256xf32>
      %375 = arith.select %373, %371, %374 : vector<1x256xi1>, vector<1x256xf32>
      %376 = arith.addf %315, %375 : vector<1x256xf32>
      %c35 = arith.constant 35 : index
      %377 = memref.load %arg2[%c35] : memref<98xf32, #tpu.memory_space<smem>>
      %378 = vector.broadcast %377 : f32 to vector<1x256xf32>
      %379 = arith.mulf %378, %32 : vector<1x256xf32>
      %c84 = arith.constant 84 : index
      %380 = memref.load %arg2[%c84] : memref<98xf32, #tpu.memory_space<smem>>
      %381 = vector.broadcast %380 : f32 to vector<1x256xf32>
      %382 = arith.mulf %381, %34 : vector<1x256xf32>
      %383 = arith.addf %379, %382 : vector<1x256xf32>
      %c36 = arith.constant 36 : index
      %384 = memref.load %arg2[%c36] : memref<98xf32, #tpu.memory_space<smem>>
      %385 = vector.broadcast %384 : f32 to vector<1x256xf32>
      %386 = arith.mulf %385, %40 : vector<1x256xf32>
      %c85 = arith.constant 85 : index
      %387 = memref.load %arg2[%c85] : memref<98xf32, #tpu.memory_space<smem>>
      %388 = vector.broadcast %387 : f32 to vector<1x256xf32>
      %389 = arith.mulf %388, %42 : vector<1x256xf32>
      %390 = arith.addf %386, %389 : vector<1x256xf32>
      %391 = arith.addf %383, %390 : vector<1x256xf32>
      %c37 = arith.constant 37 : index
      %392 = memref.load %arg2[%c37] : memref<98xf32, #tpu.memory_space<smem>>
      %393 = vector.broadcast %392 : f32 to vector<1x256xf32>
      %394 = arith.mulf %393, %48 : vector<1x256xf32>
      %c86 = arith.constant 86 : index
      %395 = memref.load %arg2[%c86] : memref<98xf32, #tpu.memory_space<smem>>
      %396 = vector.broadcast %395 : f32 to vector<1x256xf32>
      %397 = arith.mulf %396, %50 : vector<1x256xf32>
      %398 = arith.addf %394, %397 : vector<1x256xf32>
      %399 = arith.addf %391, %398 : vector<1x256xf32>
      %c38 = arith.constant 38 : index
      %400 = memref.load %arg2[%c38] : memref<98xf32, #tpu.memory_space<smem>>
      %401 = vector.broadcast %400 : f32 to vector<1x256xf32>
      %402 = arith.mulf %401, %23 : vector<1x256xf32>
      %c87 = arith.constant 87 : index
      %403 = memref.load %arg2[%c87] : memref<98xf32, #tpu.memory_space<smem>>
      %404 = vector.broadcast %403 : f32 to vector<1x256xf32>
      %405 = arith.mulf %404, %24 : vector<1x256xf32>
      %406 = arith.addf %402, %405 : vector<1x256xf32>
      %407 = arith.addf %399, %406 : vector<1x256xf32>
      %c39 = arith.constant 39 : index
      %408 = memref.load %arg2[%c39] : memref<98xf32, #tpu.memory_space<smem>>
      %409 = vector.broadcast %408 : f32 to vector<1x256xf32>
      %410 = arith.mulf %409, %56 : vector<1x256xf32>
      %c88 = arith.constant 88 : index
      %411 = memref.load %arg2[%c88] : memref<98xf32, #tpu.memory_space<smem>>
      %412 = vector.broadcast %411 : f32 to vector<1x256xf32>
      %413 = arith.mulf %412, %58 : vector<1x256xf32>
      %414 = arith.addf %410, %413 : vector<1x256xf32>
      %415 = arith.addf %407, %414 : vector<1x256xf32>
      %c40 = arith.constant 40 : index
      %416 = memref.load %arg2[%c40] : memref<98xf32, #tpu.memory_space<smem>>
      %417 = vector.broadcast %416 : f32 to vector<1x256xf32>
      %418 = arith.mulf %417, %64 : vector<1x256xf32>
      %c89 = arith.constant 89 : index
      %419 = memref.load %arg2[%c89] : memref<98xf32, #tpu.memory_space<smem>>
      %420 = vector.broadcast %419 : f32 to vector<1x256xf32>
      %421 = arith.mulf %420, %66 : vector<1x256xf32>
      %422 = arith.addf %418, %421 : vector<1x256xf32>
      %423 = arith.addf %415, %422 : vector<1x256xf32>
      %c41 = arith.constant 41 : index
      %424 = memref.load %arg2[%c41] : memref<98xf32, #tpu.memory_space<smem>>
      %425 = vector.broadcast %424 : f32 to vector<1x256xf32>
      %426 = arith.mulf %425, %72 : vector<1x256xf32>
      %c90 = arith.constant 90 : index
      %427 = memref.load %arg2[%c90] : memref<98xf32, #tpu.memory_space<smem>>
      %428 = vector.broadcast %427 : f32 to vector<1x256xf32>
      %429 = arith.mulf %428, %74 : vector<1x256xf32>
      %430 = arith.addf %426, %429 : vector<1x256xf32>
      %431 = arith.addf %423, %430 : vector<1x256xf32>
      %c224_i32 = arith.constant 224 : i32
      %432 = tpu.dynamic_rotate %431 by %c224_i32 dim 1 : vector<1x256xf32>, i32 -> vector<1x256xf32>
      %c14_i32_54 = arith.constant 14 : i32
      %433 = vector.broadcast %c14_i32_54 : i32 to vector<1x256xi32>
      %434 = arith.cmpi slt, %25, %433 : vector<1x256xi32>
      %cst_55 = arith.constant 0.000000e+00 : f32
      %435 = vector.broadcast %cst_55 : f32 to vector<1x256xf32>
      %436 = arith.select %434, %432, %435 : vector<1x256xi1>, vector<1x256xf32>
      %437 = arith.addf %376, %436 : vector<1x256xf32>
      %c42 = arith.constant 42 : index
      %438 = memref.load %arg2[%c42] : memref<98xf32, #tpu.memory_space<smem>>
      %439 = vector.broadcast %438 : f32 to vector<1x256xf32>
      %440 = arith.mulf %439, %32 : vector<1x256xf32>
      %c91 = arith.constant 91 : index
      %441 = memref.load %arg2[%c91] : memref<98xf32, #tpu.memory_space<smem>>
      %442 = vector.broadcast %441 : f32 to vector<1x256xf32>
      %443 = arith.mulf %442, %34 : vector<1x256xf32>
      %444 = arith.addf %440, %443 : vector<1x256xf32>
      %c43 = arith.constant 43 : index
      %445 = memref.load %arg2[%c43] : memref<98xf32, #tpu.memory_space<smem>>
      %446 = vector.broadcast %445 : f32 to vector<1x256xf32>
      %447 = arith.mulf %446, %40 : vector<1x256xf32>
      %c92 = arith.constant 92 : index
      %448 = memref.load %arg2[%c92] : memref<98xf32, #tpu.memory_space<smem>>
      %449 = vector.broadcast %448 : f32 to vector<1x256xf32>
      %450 = arith.mulf %449, %42 : vector<1x256xf32>
      %451 = arith.addf %447, %450 : vector<1x256xf32>
      %452 = arith.addf %444, %451 : vector<1x256xf32>
      %c44 = arith.constant 44 : index
      %453 = memref.load %arg2[%c44] : memref<98xf32, #tpu.memory_space<smem>>
      %454 = vector.broadcast %453 : f32 to vector<1x256xf32>
      %455 = arith.mulf %454, %48 : vector<1x256xf32>
      %c93 = arith.constant 93 : index
      %456 = memref.load %arg2[%c93] : memref<98xf32, #tpu.memory_space<smem>>
      %457 = vector.broadcast %456 : f32 to vector<1x256xf32>
      %458 = arith.mulf %457, %50 : vector<1x256xf32>
      %459 = arith.addf %455, %458 : vector<1x256xf32>
      %460 = arith.addf %452, %459 : vector<1x256xf32>
      %c45 = arith.constant 45 : index
      %461 = memref.load %arg2[%c45] : memref<98xf32, #tpu.memory_space<smem>>
      %462 = vector.broadcast %461 : f32 to vector<1x256xf32>
      %463 = arith.mulf %462, %23 : vector<1x256xf32>
      %c94 = arith.constant 94 : index
      %464 = memref.load %arg2[%c94] : memref<98xf32, #tpu.memory_space<smem>>
      %465 = vector.broadcast %464 : f32 to vector<1x256xf32>
      %466 = arith.mulf %465, %24 : vector<1x256xf32>
      %467 = arith.addf %463, %466 : vector<1x256xf32>
      %468 = arith.addf %460, %467 : vector<1x256xf32>
      %c46 = arith.constant 46 : index
      %469 = memref.load %arg2[%c46] : memref<98xf32, #tpu.memory_space<smem>>
      %470 = vector.broadcast %469 : f32 to vector<1x256xf32>
      %471 = arith.mulf %470, %56 : vector<1x256xf32>
      %c95 = arith.constant 95 : index
      %472 = memref.load %arg2[%c95] : memref<98xf32, #tpu.memory_space<smem>>
      %473 = vector.broadcast %472 : f32 to vector<1x256xf32>
      %474 = arith.mulf %473, %58 : vector<1x256xf32>
      %475 = arith.addf %471, %474 : vector<1x256xf32>
      %476 = arith.addf %468, %475 : vector<1x256xf32>
      %c47 = arith.constant 47 : index
      %477 = memref.load %arg2[%c47] : memref<98xf32, #tpu.memory_space<smem>>
      %478 = vector.broadcast %477 : f32 to vector<1x256xf32>
      %479 = arith.mulf %478, %64 : vector<1x256xf32>
      %c96 = arith.constant 96 : index
      %480 = memref.load %arg2[%c96] : memref<98xf32, #tpu.memory_space<smem>>
      %481 = vector.broadcast %480 : f32 to vector<1x256xf32>
      %482 = arith.mulf %481, %66 : vector<1x256xf32>
      %483 = arith.addf %479, %482 : vector<1x256xf32>
      %484 = arith.addf %476, %483 : vector<1x256xf32>
      %c48 = arith.constant 48 : index
      %485 = memref.load %arg2[%c48] : memref<98xf32, #tpu.memory_space<smem>>
      %486 = vector.broadcast %485 : f32 to vector<1x256xf32>
      %487 = arith.mulf %486, %72 : vector<1x256xf32>
      %c97 = arith.constant 97 : index
      %488 = memref.load %arg2[%c97] : memref<98xf32, #tpu.memory_space<smem>>
      %489 = vector.broadcast %488 : f32 to vector<1x256xf32>
      %490 = arith.mulf %489, %74 : vector<1x256xf32>
      %491 = arith.addf %487, %490 : vector<1x256xf32>
      %492 = arith.addf %484, %491 : vector<1x256xf32>
      %c208_i32 = arith.constant 208 : i32
      %493 = tpu.dynamic_rotate %492 by %c208_i32 dim 1 : vector<1x256xf32>, i32 -> vector<1x256xf32>
      %c13_i32_56 = arith.constant 13 : i32
      %494 = vector.broadcast %c13_i32_56 : i32 to vector<1x256xi32>
      %495 = arith.cmpi slt, %25, %494 : vector<1x256xi32>
      %cst_57 = arith.constant 0.000000e+00 : f32
      %496 = vector.broadcast %cst_57 : f32 to vector<1x256xf32>
      %497 = arith.select %495, %493, %496 : vector<1x256xi1>, vector<1x256xf32>
      %498 = arith.addf %437, %497 : vector<1x256xf32>
      %499 = arith.negf %498 : vector<1x256xf32>
      %500 = math.exp %499 : vector<1x256xf32>
      %cst_58 = arith.constant 1.000000e+00 : f32
      %501 = vector.broadcast %cst_58 : f32 to vector<1x256xf32>
      %502 = arith.addf %501, %500 : vector<1x256xf32>
      %503 = arith.divf %501, %502 : vector<1x256xf32>
      %c0_59 = arith.constant 0 : index
      %c0_60 = arith.constant 0 : index
      %c0_61 = arith.constant 0 : index
      %504 = vector.load %arg6[%c0_59, %c0_60, %c0_61] : memref<1x1x256xf32, #tpu.memory_space<vmem>>, vector<1x1x256xf32>
      %505 = vector.shape_cast %504 : vector<1x1x256xf32> to vector<1x256xf32>
      %506 = vector.shape_cast %503 : vector<1x256xf32> to vector<1x1x256xf32>
      tpu.vector_store %arg6[%c0_59, %c0_60, %c0_61], %506 {strides = array<i32>} : memref<1x1x256xf32, #tpu.memory_space<vmem>>, vector<1x1x256xf32>,
    } else {
    }
    return
  }
  func.func @transform_0(%arg0: i32, %arg1: i32) -> i32 {
    %c0_i32 = arith.constant 0 : i32
    %c0_i32_0 = arith.constant 0 : i32
    return %c0_i32 : i32
  }
  func.func @transform_1(%arg0: i32, %arg1: i32) -> i32 {
    %c0_i32 = arith.constant 0 : i32
    %c0_i32_0 = arith.constant 0 : i32
    return %c0_i32 : i32
  }
  func.func @transform_2(%arg0: i32, %arg1: i32) -> (i32, i32) {
    %c0_i32 = arith.constant 0 : i32
    %c0_i32_0 = arith.constant 0 : i32
    %c0_i32_1 = arith.constant 0 : i32
    return %c0_i32, %c0_i32_0 : i32, i32
  }
  func.func @transform_3(%arg0: i32, %arg1: i32) -> (i32, i32, i32) {
    %c0_i32 = arith.constant 0 : i32
    %c0_i32_0 = arith.constant 0 : i32
    return %arg0, %arg1, %c0_i32 : i32, i32, i32
  }
  func.func @transform_4(%arg0: i32, %arg1: i32) -> (i32, i32, i32) {
    %c0_i32 = arith.constant 0 : i32
    %c0_i32_0 = arith.constant 0 : i32
    %c0_i32_1 = arith.constant 0 : i32
    return %arg0, %c0_i32, %c0_i32_0 : i32, i32, i32
  }
}

</mosaic_0001>

<llo_original>
// kernel: tpu_custom_call.1
$region0: #{tpu_custom_call.1}
  #allocation0 [shape = 'u32[]', space=smem, size = 0x4, offset = 0x4, fixed_abs, tag = 'smem constant byte address 0x4 - core index']
  #allocation1 [shape = 'u32[144,128]{1,0:T(1,128)}', space=vmem, size = 0x12000, scoped, tag = 'internal scratch']
  #allocation2 [shape = 'f32[1,256]{1,0:T(1,128)}', space=vmem, size = 0x400, scoped, tag = 'scratch operand']
  #allocation3 [shape = 'f32[1,256]{1,0:T(1,128)}', space=vmem, size = 0x400, scoped, tag = 'scratch operand']
  #allocation4 [shape = 'f32[1]{0:T(128)S(6)}', space=smem, size = 0x200, scoped, tag = 'scoped memory for tpu_custom_call.1']
  %s0 = inlined_call_operand.vmem [shape: f32[98], index: 0, kind: input, shape index: {}]
  %s1 = inlined_call_operand.<no memory space> [shape: f32[1], index: 1, kind: input, shape index: {}]
  %s2 = inlined_call_operand.vmem [shape: s32[2,256], index: 2, kind: input, shape index: {}]
  %s3 = inlined_call_operand.hbm [shape: f32[2,4,256], index: 3, kind: input, shape index: {}]
  %s4 = inlined_call_operand.hbm [shape: f32[2,1,256], index: 4, kind: output, shape index: {}]
  %s5 = sld [smem:[#allocation0]]
  $region69: #{tpu_custom_call.1} parent=0
    _
  %s7 = ssub.s32 1, %s5
  %s8 = scalar_select 0, %s7, %s5
  %9 = sst [smem:[#allocation4]] %s1
  $region1: #{tpu_custom_call.1} parent=0
    #allocation5 [shape = 'u8[512]{0}', space=smem, size = 0x200, scoped, tag = 'input window, operand 0, single buffered']
    #allocation6 [shape = 's32[2]{0}', space=sflag, size = 0x8, scoped, tag = 'scoped memory for tpu_custom_call.1']
    #allocation7 [shape = 's32[2]{0}', space=sflag, size = 0x8, scoped, tag = 'scoped memory for tpu_custom_call.1']
    #allocation8 [shape = 's32[2]{0}', space=sflag, size = 0x8, scoped, tag = 'scoped memory for tpu_custom_call.1']
    #allocation9 [shape = 'u8[8192]{0}', space=vmem, size = 0x2000, scoped, tag = 'input window, operand 3']
    #allocation10 [shape = 'u8[2048]{0}', space=vmem, size = 0x800, scoped, tag = 'output window, operand 0']
    %10 = vsyncpa [#allocation8], 0
    %11 = vsyncpa [#allocation6], 0
    %s12 = scalar_lea.sflag [#allocation6], 1
    %13 = vsyncpa %s12, 0
    %14 = vsyncpa [#allocation7], 0
    %s15 = scalar_lea.sflag [#allocation7], 1
    %16 = vsyncpa %s15, 0
    loop: start=0, step=1, limit=4
    $region2: #{tpu_custom_call.1} parent=1 // loop_pre_header
      _
    $region3: #{tpu_custom_call.1} parent=1 // loop_header
      %s18 = sphi 0, %s22
      %p19 = scmp.ge.s32.totalorder %s18, 4
      %s25 = sphi 0, %s37
      %s26 = sphi 0, %s33
      %s27 = sphi 0, %s25
      %s28 = sphi 0, %s26
      %s29 = sphi 0, %s27
      %s30 = sphi 0, %s28
      %s38 = sphi 0, %s38
      %s40 = sphi 0, %s38
      %s41 = sphi 0, %s40
      %s55 = sphi 0, %s41
      %s59 = sphi 0, %s59
      %s61 = sphi 0, %s59
      %s62 = sphi 0, %s61
      %s76 = sphi 0, %s62
      %s80 = sphi 0, %s80
      %s82 = sphi 0, %s80
      %s83 = sphi 0, %s82
      %s97 = sphi 0, %s83
      %s105 = sphi 0, %s107
      %s108 = sphi 0, %s105
      %s109 = sphi 0, %s108
      %s125 = sphi 0, %s109
      %s131 = sphi 0, %s133
      %s134 = sphi 0, %s131
      %s135 = sphi 0, %s134
      %s151 = sphi 0, %s135
    $region4: #{tpu_custom_call.1} parent=1 // loop_header_branch
      %21 = sbr.rel (%p19) target = $region8
    $region5: #{tpu_custom_call.1} parent=1 // loop_body
      %s23 = ssub.s32 %s18, 1
      %s24 = ssub.s32 %s18, 2
      %s31 = sadd.s32 1, %s26
      %p32 = scmp.ge.s32.totalorder %s31, 1
      %s33 = scalar_select %p32, 0, %s31
      %s34 = sadd.s32 1, %s25
      %s35 = scalar_select %p32, %s34, %s25
      %p36 = scmp.ge.s32.totalorder %s35, 2
      %s37 = scalar_select %p36, 0, %s35
      %s39 = sadd.s32 %s38, 1
      %p42 = scmp.eq.s32.totalorder %s18, 1
      %p43 = scmp.ne.s32.totalorder %s38, %s40
      %p44 = scmp.eq.s32.totalorder %s18, 0
      %p45 = por %p43, %p44
      %p46 = scmp.ne.s32.totalorder %s38, %s40
      %p47 = scmp.eq.s32.totalorder %s23, 1
      %p48 = por %p46, %p47
      %p49 = scmp.ne.s32.totalorder %s40, %s41
      %p50 = scmp.eq.s32.totalorder %s23, 0
      %p51 = por %p49, %p50
      %p52 = scmp.ne.s32.totalorder %s40, %s41
      %p53 = scmp.eq.s32.totalorder %s24, 1
      %p54 = por %p52, %p53
      %p56 = scmp.ne.s32.totalorder %s41, %s55
      %p57 = scmp.eq.s32.totalorder %s24, 0
      %p58 = por %p56, %p57
      %s60 = sadd.s32 %s59, 1
      %p63 = scmp.eq.s32.totalorder %s18, 1
      %p64 = scmp.ne.s32.totalorder %s59, %s61
      %p65 = scmp.eq.s32.totalorder %s18, 0
      %p66 = por %p64, %p65
      %p67 = scmp.ne.s32.totalorder %s59, %s61
      %p68 = scmp.eq.s32.totalorder %s23, 1
      %p69 = por %p67, %p68
      %p70 = scmp.ne.s32.totalorder %s61, %s62
      %p71 = scmp.eq.s32.totalorder %s23, 0
      %p72 = por %p70, %p71
      %p73 = scmp.ne.s32.totalorder %s61, %s62
      %p74 = scmp.eq.s32.totalorder %s24, 1
      %p75 = por %p73, %p74
      %p77 = scmp.ne.s32.totalorder %s62, %s76
      %p78 = scmp.eq.s32.totalorder %s24, 0
      %p79 = por %p77, %p78
      %s81 = sadd.s32 %s80, 1
      %p84 = scmp.eq.s32.totalorder %s18, 1
      %p85 = scmp.ne.s32.totalorder %s80, %s82
      %p86 = scmp.eq.s32.totalorder %s18, 0
      %p87 = por %p85, %p86
      %p88 = scmp.ne.s32.totalorder %s80, %s82
      %p89 = scmp.eq.s32.totalorder %s23, 1
      %p90 = por %p88, %p89
      %p91 = scmp.ne.s32.totalorder %s82, %s83
      %p92 = scmp.eq.s32.totalorder %s23, 0
      %p93 = por %p91, %p92
      %p94 = scmp.ne.s32.totalorder %s82, %s83
      %p95 = scmp.eq.s32.totalorder %s24, 1
      %p96 = por %p94, %p95
      %p98 = scmp.ne.s32.totalorder %s83, %s97
      %p99 = scmp.eq.s32.totalorder %s24, 0
      %p100 = por %p98, %p99
      %s101 = ssub.s32 %s25, %s37
      %s102 = ssub.s32 %s26, %s33
      %s103 = sor.u32 %s101, %s102
      %p104 = scmp.eq.s32.totalorder %s103, 0
      %s106 = sadd.s32 %s105, 1
      %s107 = scalar_select %p104, %s105, %s106
      %p110 = pneg %p104
      %p111 = scmp.eq.s32.totalorder %s18, 1
      %p112 = por %p110, %p111
      %p113 = scmp.ne.s32.totalorder %s105, %s108
      %p114 = scmp.eq.s32.totalorder %s18, 0
      %p115 = por %p113, %p114
      %p116 = scmp.ne.s32.totalorder %s105, %s108
      %p117 = scmp.eq.s32.totalorder %s23, 1
      %p118 = por %p116, %p117
      %p119 = scmp.ne.s32.totalorder %s108, %s109
      %p120 = scmp.eq.s32.totalorder %s23, 0
      %p121 = por %p119, %p120
      %p122 = scmp.ne.s32.totalorder %s108, %s109
      %p123 = scmp.eq.s32.totalorder %s24, 1
      %p124 = por %p122, %p123
      %p126 = scmp.ne.s32.totalorder %s109, %s125
      %p127 = scmp.eq.s32.totalorder %s24, 0
      %p128 = por %p126, %p127
      %s129 = ssub.s32 %s25, %s37
      %p130 = scmp.eq.s32.totalorder %s129, 0
      %s132 = sadd.s32 %s131, 1
      %s133 = scalar_select %p130, %s131, %s132
      %p136 = pneg %p130
      %p137 = scmp.eq.s32.totalorder %s18, 1
      %p138 = por %p136, %p137
      %p139 = scmp.ne.s32.totalorder %s131, %s134
      %p140 = scmp.eq.s32.totalorder %s18, 0
      %p141 = por %p139, %p140
      %p142 = scmp.ne.s32.totalorder %s131, %s134
      %p143 = scmp.eq.s32.totalorder %s23, 1
      %p144 = por %p142, %p143
      %p145 = scmp.ne.s32.totalorder %s134, %s135
      %p146 = scmp.eq.s32.totalorder %s23, 0
      %p147 = por %p145, %p146
      %p148 = scmp.ne.s32.totalorder %s134, %s135
      %p149 = scmp.eq.s32.totalorder %s24, 1
      %p150 = por %p148, %p149
      %p152 = scmp.ne.s32.totalorder %s135, %s151
      %p153 = scmp.eq.s32.totalorder %s24, 0
      %p154 = por %p152, %p153
      %p155 = scmp.le.s32.totalorder 1, %s18
      %p156 = scmp.lt.s32.totalorder %s18, 3
      %p157 = pnand %p155, %p156
      %p158 = pneg %p157
      // Predicated region
      $region9: #{tpu_custom_call.1} parent=5 // pred_check
        _
      $region10: #{tpu_custom_call.1} parent=5 // pred_check_branch
        %160 = sbr.rel (%p157) target = $region12
      $region11: #{tpu_custom_call.1} parent=5 // pred_region
        %s161 = ssub.s32 %s18, 1
        // Predicated region
        $region13: #{tpu_custom_call.1} parent=11 // pred_check
          %p162 = pneg %p51
        $region14: #{tpu_custom_call.1} parent=11 // pred_check_branch
          %164 = sbr.rel (%p162) target = $region16
        $region15: #{tpu_custom_call.1} parent=11 // pred_region
          %s166 = ssub.s32 16, 16
          %167 = vsyncadd [#allocation8], %s166
          %s169 = sshll.u32 %s0, 4
          %s170 = int_to_ptr.vmem [resolvable:$true] %s169
          %172 = dma.vmem_to_smem %s170, 16, [#allocation5], [#allocation8]
        $region16: #{tpu_custom_call.1} parent=11 // pred_fallthru
          _
        // Predicated region
        $region17: #{tpu_custom_call.1} parent=11 // pred_check
          %p173 = pneg %p72
        $region18: #{tpu_custom_call.1} parent=11 // pred_check_branch
          %175 = sbr.rel (%p173) target = $region20
        $region19: #{tpu_custom_call.1} parent=11 // pred_region
          _
        $region20: #{tpu_custom_call.1} parent=11 // pred_fallthru
          _
        // Predicated region
        $region21: #{tpu_custom_call.1} parent=11 // pred_check
          %p176 = pneg %p93
        $region22: #{tpu_custom_call.1} parent=11 // pred_check_branch
          %178 = sbr.rel (%p176) target = $region24
        $region23: #{tpu_custom_call.1} parent=11 // pred_region
          _
        $region24: #{tpu_custom_call.1} parent=11 // pred_fallthru
          _
      $region12: #{tpu_custom_call.1} parent=5 // pred_fallthru
        _
      %p179 = scmp.lt.s32.totalorder %s18, 2
      // Predicated region
      $region25: #{tpu_custom_call.1} parent=5 // pred_check
        %p180 = pneg %p179
      $region26: #{tpu_custom_call.1} parent=5 // pred_check_branch
        %182 = sbr.rel (%p180) target = $region28
      $region27: #{tpu_custom_call.1} parent=5 // pred_region
        // Predicated region
        $region29: #{tpu_custom_call.1} parent=27 // pred_check
          %p183 = pneg %p115
        $region30: #{tpu_custom_call.1} parent=27 // pred_check_branch
          %185 = sbr.rel (%p183) target = $region32
        $region31: #{tpu_custom_call.1} parent=27 // pred_region
          %s186 = sand.u32 %s105, 1
          %s187 = scalar_lea.sflag [#allocation6], %s186
          %s188 = sand.u32 %s105, 1
          %s189 = smul.addr %s188, 8
          %s190 = scalar_lea.vmem [#allocation9], %s189
          %s192 = ssub.s32 128, 128
          %193 = vsyncadd %s187, %s192
          %s194 = smul.addr %s26, 2
          %s195 = smul.addr %s25, 2
          %s196 = sadd.s32 %s194, %s195
          %s197 = smul.addr %s196, 64
          %s198 = scalar_lea.hbm %s3, %s197
          %s200 = sshll.u32 %s190, 4
          %s201 = int_to_ptr.vmem [resolvable:$true] %s200
          %203 = dma.hbm_to_vmem [thread:$0]  %s198, 128, %s201, %s187
        $region32: #{tpu_custom_call.1} parent=27 // pred_fallthru
          _
      $region28: #{tpu_custom_call.1} parent=5 // pred_fallthru
        _
      %p204 = scmp.le.s32.totalorder 1, %s18
      %p205 = scmp.lt.s32.totalorder %s18, 3
      %p206 = pnand %p204, %p205
      %p207 = pneg %p206
      // Predicated region
      $region33: #{tpu_custom_call.1} parent=5 // pred_check
        _
      $region34: #{tpu_custom_call.1} parent=5 // pred_check_branch
        %209 = sbr.rel (%p206) target = $region36
      $region35: #{tpu_custom_call.1} parent=5 // pred_region
        %s210 = ssub.s32 %s18, 1
        // Predicated region
        $region37: #{tpu_custom_call.1} parent=35 // pred_check
          %p211 = pneg %p51
        $region38: #{tpu_custom_call.1} parent=35 // pred_check_branch
          %213 = sbr.rel (%p211) target = $region40
        $region39: #{tpu_custom_call.1} parent=35 // pred_region
          %214 = dma.done [#allocation8], 16
        $region40: #{tpu_custom_call.1} parent=35 // pred_fallthru
          _
        %s215 = sand.u32 %s108, 1
        %s216 = scalar_lea.sflag [#allocation6], %s215
        %s217 = sand.u32 %s108, 1
        %s218 = smul.addr %s217, 8
        %s219 = scalar_lea.vmem [#allocation9], %s218
        // Predicated region
        $region41: #{tpu_custom_call.1} parent=35 // pred_check
          %p220 = pneg %p121
        $region42: #{tpu_custom_call.1} parent=35 // pred_check_branch
          %222 = sbr.rel (%p220) target = $region44
        $region43: #{tpu_custom_call.1} parent=35 // pred_region
          %223 = dma.done %s216, 128
        $region44: #{tpu_custom_call.1} parent=35 // pred_fallthru
          _
        %224 = sfence
        %p225 = pneg %p51
        %p226 = pneg %p48
        %p227 = pneg %p72
        %p228 = pneg %p69
        %p229 = pneg %p93
        %p230 = pneg %p90
        %s231 = sand.u32 %s108, 1
        %s232 = scalar_lea.sflag [#allocation6], %s231
        %s233 = sand.u32 %s108, 1
        %s234 = smul.addr %s233, 8
        %s235 = scalar_lea.vmem [#allocation9], %s234
        %p236 = pneg %p121
        %p237 = pneg %p118
        %p238 = pneg %p147
        %p239 = pneg %p144
        %s240 = sand.u32 %s134, 1
        %s241 = scalar_lea.sflag [#allocation7], %s240
        %s242 = sand.u32 %s134, 1
        %s243 = smul.addr %s242, 2
        %s244 = scalar_lea.vmem [#allocation10], %s243
        %v245 = vld [vmem:[%s219] ss:$4 sm:$0x3]
        %s246 = scalar_lea.vmem %s219, 1 [#allocation9]
        %v247 = vld [vmem:[%s246] ss:$4 sm:$0x3]
        %s248 = scalar_lea.vmem %s219, 2 [#allocation9]
        %v249 = vld [vmem:[%s248] ss:$4 sm:$0x3]
        %s250 = scalar_lea.vmem %s219, 3 [#allocation9]
        %v251 = vld [vmem:[%s250] ss:$4 sm:$0x3]
        %v252 = vadd.f32 %v245, %v247
        %v253 = vadd.f32 %v249, %v251
        %v254 = vmax.f32 %v245, %v247
        %v255 = vmax.f32 %v249, %v251
        %v256 = vadd.f32 %v252, %v253
        %v257 = vmax.f32 %v254, %v255
        %p258 = scmp.eq.s32.totalorder %s28, 0
        // Predicated region
        $region45: #{tpu_custom_call.1} parent=35 // pred_check
          %p259 = pneg %p258
        $region46: #{tpu_custom_call.1} parent=35 // pred_check_branch
          %261 = sbr.rel (%p259) target = $region48
        $region47: #{tpu_custom_call.1} parent=35 // pred_region
          %v262 = vlaneseq
          %vm263 = vcmp.ge.s32.totalorder %v262, 0
          %vm264 = vcmp.lt.s32.totalorder %v262, 256
          %vm265 = vmand %vm263, %vm264
          %266 = vst.msk [vmem:[#allocation2] sm:$0x3] %vm265, %v256
          %267 = vst.msk [vmem:[#allocation3] sm:$0x3] %vm265, %v257
        $region48: #{tpu_custom_call.1} parent=35 // pred_fallthru
          _
        %p268 = scmp.ne.s32.totalorder %s28, 0
        // Predicated region
        $region49: #{tpu_custom_call.1} parent=35 // pred_check
          %p269 = pneg %p268
        $region50: #{tpu_custom_call.1} parent=35 // pred_check_branch
          %271 = sbr.rel (%p269) target = $region52
        $region51: #{tpu_custom_call.1} parent=35 // pred_region
          %v272 = vld [vmem:[#allocation2] sm:$0x3]
          %v273 = vadd.f32 %v272, %v256
          %v274 = vlaneseq
          %vm275 = vcmp.ge.s32.totalorder %v274, 0
          %vm276 = vcmp.lt.s32.totalorder %v274, 256
          %vm277 = vmand %vm275, %vm276
          %278 = vst.msk [vmem:[#allocation2] sm:$0x3] %vm277, %v273
          %v279 = vld [vmem:[#allocation3] sm:$0x3]
          %v280 = vmax.f32 %v279, %v257
          %281 = vst.msk [vmem:[#allocation3] sm:$0x3] %vm277, %v280
        $region52: #{tpu_custom_call.1} parent=35 // pred_fallthru
          _
        // Predicated region
        $region53: #{tpu_custom_call.1} parent=35 // pred_check
          %p282 = pneg %p258
        $region54: #{tpu_custom_call.1} parent=35 // pred_check_branch
          %284 = sbr.rel (%p282) target = $region56
        $region55: #{tpu_custom_call.1} parent=35 // pred_region
          %v285 = vld [vmem:[#allocation2] sm:$0x3]
          %v286 = vld [vmem:[#allocation3] sm:$0x3]
          %v287 = vld [vmem:[%s2] ss:$2 sm:$0x3]
          %s288 = scalar_lea.vmem %s2, 1
          %v289 = vld [vmem:[%s288] ss:$2 sm:$0x3]
          %v291 = vlaneseq
          %v292 = vshrl.u32 %v291, 7
          %v293 = vsub.s32 0, %v292
          %v294 = vrot.slane %v285, %v293
          %v295 = vlaneseq
          %v296 = vshrl.u32 %v295, 7
          %v297 = vsub.s32 1, %v296
          %v298 = vrot.slane %v285, %v297
          %301 = vrot.lane.b32.xlu0 %v294, 3
          %v302 = vpop.permute.xlu0 %301
          %303 = vrot.lane.b32.xlu0 %v298, 3
          %v304 = vpop.permute.xlu0 %303
          %v305 = vlaneseq
          %v306 = vand.u32 %v305, 127
          %vm307 = vcmp.lt.s32.totalorder %v306, 3
          %v308 = vsel %vm307, %v302, %v304
          %v309 = vsel %vm307, %v304, %v302
          %v311 = vlaneseq
          %v312 = vshrl.u32 %v311, 7
          %v313 = vsub.s32 0, %v312
          %v314 = vrot.slane %v286, %v313
          %v315 = vlaneseq
          %v316 = vshrl.u32 %v315, 7
          %v317 = vsub.s32 1, %v316
          %v318 = vrot.slane %v286, %v317
          %321 = vrot.lane.b32.xlu0 %v314, 3
          %v322 = vpop.permute.xlu0 %321
          %323 = vrot.lane.b32.xlu0 %v318, 3
          %v324 = vpop.permute.xlu0 %323
          %v325 = vsel %vm307, %v322, %v324
          %v326 = vsel %vm307, %v324, %v322
          %vm327 = vcmp.ge.s32.totalorder %v289, 3
          %v330 = vcombine.low %v309, %v308
          %v332 = vunpack.c.l.s4 1966171168
          %v333 = vunpack.c.0.s8 %v332
          %v334 = vlaneseq
          %v335 = vshrl.u32 %v334, 7
          %v336 = vsub.s32 %v333, %v335
          %v337 = vrot.slane %v330, %v336
          %v339 = vunpack.c.l.s4 1966171168
          %v340 = vunpack.c.0.s8 %v339
          %v341 = vlaneseq
          %v342 = vshrl.u32 %v341, 7
          %v343 = vsub.s32 %v340, %v342
          %v344 = vrot.slane %v337, %v343
          %v346 = vsel %vm327, %v344, 0.0
          %v349 = vcombine.low %v326, %v325
          %v351 = vunpack.c.l.s4 1966171168
          %v352 = vunpack.c.0.s8 %v351
          %v353 = vlaneseq
          %v354 = vshrl.u32 %v353, 7
          %v355 = vsub.s32 %v352, %v354
          %v356 = vrot.slane %v349, %v355
          %v358 = vunpack.c.l.s4 1966171168
          %v359 = vunpack.c.0.s8 %v358
          %v360 = vlaneseq
          %v361 = vshrl.u32 %v360, 7
          %v362 = vsub.s32 %v359, %v361
          %v363 = vrot.slane %v356, %v362
          %v365 = vsel %vm327, %v363, 0.0
          %366 = vrot.lane.b32.xlu0 %v294, 2
          %v367 = vpop.permute.xlu0 %366
          %368 = vrot.lane.b32.xlu0 %v298, 2
          %v369 = vpop.permute.xlu0 %368
          %vm370 = vcmp.lt.s32.totalorder %v306, 2
          %v371 = vsel %vm370, %v367, %v369
          %v372 = vsel %vm370, %v369, %v367
          %373 = vrot.lane.b32.xlu0 %v314, 2
          %v374 = vpop.permute.xlu0 %373
          %375 = vrot.lane.b32.xlu0 %v318, 2
          %v376 = vpop.permute.xlu0 %375
          %v377 = vsel %vm370, %v374, %v376
          %v378 = vsel %vm370, %v376, %v374
          %vm379 = vcmp.ge.s32.totalorder %v289, 2
          %v382 = vcombine.low %v372, %v371
          %v384 = vunpack.c.l.s4 1966171168
          %v385 = vunpack.c.0.s8 %v384
          %v386 = vlaneseq
          %v387 = vshrl.u32 %v386, 7
          %v388 = vsub.s32 %v385, %v387
          %v389 = vrot.slane %v382, %v388
          %v391 = vunpack.c.l.s4 1966171168
          %v392 = vunpack.c.0.s8 %v391
          %v393 = vlaneseq
          %v394 = vshrl.u32 %v393, 7
          %v395 = vsub.s32 %v392, %v394
          %v396 = vrot.slane %v389, %v395
          %v398 = vsel %vm379, %v396, 0.0
          %v401 = vcombine.low %v378, %v377
          %v403 = vunpack.c.l.s4 1966171168
          %v404 = vunpack.c.0.s8 %v403
          %v405 = vlaneseq
          %v406 = vshrl.u32 %v405, 7
          %v407 = vsub.s32 %v404, %v406
          %v408 = vrot.slane %v401, %v407
          %v410 = vunpack.c.l.s4 1966171168
          %v411 = vunpack.c.0.s8 %v410
          %v412 = vlaneseq
          %v413 = vshrl.u32 %v412, 7
          %v414 = vsub.s32 %v411, %v413
          %v415 = vrot.slane %v408, %v414
          %v417 = vsel %vm379, %v415, 0.0
          %418 = vrot.lane.b32.xlu0 %v294, 1
          %v419 = vpop.permute.xlu0 %418
          %420 = vrot.lane.b32.xlu0 %v298, 1
          %v421 = vpop.permute.xlu0 %420
          %vm422 = vcmp.lt.s32.totalorder %v306, 1
          %v423 = vsel %vm422, %v419, %v421
          %v424 = vsel %vm422, %v421, %v419
          %425 = vrot.lane.b32.xlu0 %v314, 1
          %v426 = vpop.permute.xlu0 %425
          %427 = vrot.lane.b32.xlu0 %v318, 1
          %v428 = vpop.permute.xlu0 %427
          %v429 = vsel %vm422, %v426, %v428
          %v430 = vsel %vm422, %v428, %v426
          %vm431 = vcmp.ge.s32.totalorder %v289, 1
          %v434 = vcombine.low %v424, %v423
          %v436 = vunpack.c.l.s4 1966171168
          %v437 = vunpack.c.0.s8 %v436
          %v438 = vlaneseq
          %v439 = vshrl.u32 %v438, 7
          %v440 = vsub.s32 %v437, %v439
          %v441 = vrot.slane %v434, %v440
          %v443 = vunpack.c.l.s4 1966171168
          %v444 = vunpack.c.0.s8 %v443
          %v445 = vlaneseq
          %v446 = vshrl.u32 %v445, 7
          %v447 = vsub.s32 %v444, %v446
          %v448 = vrot.slane %v441, %v447
          %v450 = vsel %vm431, %v448, 0.0
          %v453 = vcombine.low %v430, %v429
          %v455 = vunpack.c.l.s4 1966171168
          %v456 = vunpack.c.0.s8 %v455
          %v457 = vlaneseq
          %v458 = vshrl.u32 %v457, 7
          %v459 = vsub.s32 %v456, %v458
          %v460 = vrot.slane %v453, %v459
          %v462 = vunpack.c.l.s4 1966171168
          %v463 = vunpack.c.0.s8 %v462
          %v464 = vlaneseq
          %v465 = vshrl.u32 %v464, 7
          %v466 = vsub.s32 %v463, %v465
          %v467 = vrot.slane %v460, %v466
          %v469 = vsel %vm431, %v467, 0.0
          %470 = vrot.lane.b32.xlu0 %v294, 127
          %v471 = vpop.permute.xlu0 %470
          %472 = vrot.lane.b32.xlu0 %v298, 127
          %v473 = vpop.permute.xlu0 %472
          %vm474 = vcmp.lt.s32.totalorder %v306, 127
          %v475 = vsel %vm474, %v471, %v473
          %v476 = vsel %vm474, %v473, %v471
          %477 = vrot.lane.b32.xlu0 %v314, 127
          %v478 = vpop.permute.xlu0 %477
          %479 = vrot.lane.b32.xlu0 %v318, 127
          %v480 = vpop.permute.xlu0 %479
          %v481 = vsel %vm474, %v478, %v480
          %v482 = vsel %vm474, %v480, %v478
          %vm483 = vcmp.lt.s32.totalorder %v289, 15
          %v486 = vcombine.low %v475, %v476
          %v488 = vunpack.c.l.s4 1966171168
          %v489 = vunpack.c.0.s8 %v488
          %v490 = vlaneseq
          %v491 = vshrl.u32 %v490, 7
          %v492 = vsub.s32 %v489, %v491
          %v493 = vrot.slane %v486, %v492
          %v495 = vunpack.c.l.s4 1966171168
          %v496 = vunpack.c.0.s8 %v495
          %v497 = vlaneseq
          %v498 = vshrl.u32 %v497, 7
          %v499 = vsub.s32 %v496, %v498
          %v500 = vrot.slane %v493, %v499
          %v502 = vsel %vm483, %v500, 0.0
          %v505 = vcombine.low %v481, %v482
          %v507 = vunpack.c.l.s4 1966171168
          %v508 = vunpack.c.0.s8 %v507
          %v509 = vlaneseq
          %v510 = vshrl.u32 %v509, 7
          %v511 = vsub.s32 %v508, %v510
          %v512 = vrot.slane %v505, %v511
          %v514 = vunpack.c.l.s4 1966171168
          %v515 = vunpack.c.0.s8 %v514
          %v516 = vlaneseq
          %v517 = vshrl.u32 %v516, 7
          %v518 = vsub.s32 %v515, %v517
          %v519 = vrot.slane %v512, %v518
          %v521 = vsel %vm483, %v519, 0.0
          %522 = vrot.lane.b32.xlu0 %v294, 126
          %v523 = vpop.permute.xlu0 %522
          %524 = vrot.lane.b32.xlu0 %v298, 126
          %v525 = vpop.permute.xlu0 %524
          %vm526 = vcmp.lt.s32.totalorder %v306, 126
          %v527 = vsel %vm526, %v523, %v525
          %v528 = vsel %vm526, %v525, %v523
          %529 = vrot.lane.b32.xlu0 %v314, 126
          %v530 = vpop.permute.xlu0 %529
          %531 = vrot.lane.b32.xlu0 %v318, 126
          %v532 = vpop.permute.xlu0 %531
          %v533 = vsel %vm526, %v530, %v532
          %v534 = vsel %vm526, %v532, %v530
          %vm535 = vcmp.lt.s32.totalorder %v289, 14
          %v538 = vcombine.low %v527, %v528
          %v540 = vunpack.c.l.s4 1966171168
          %v541 = vunpack.c.0.s8 %v540
          %v542 = vlaneseq
          %v543 = vshrl.u32 %v542, 7
          %v544 = vsub.s32 %v541, %v543
          %v545 = vrot.slane %v538, %v544
          %v547 = vunpack.c.l.s4 1966171168
          %v548 = vunpack.c.0.s8 %v547
          %v549 = vlaneseq
          %v550 = vshrl.u32 %v549, 7
          %v551 = vsub.s32 %v548, %v550
          %v552 = vrot.slane %v545, %v551
          %v554 = vsel %vm535, %v552, 0.0
          %v557 = vcombine.low %v533, %v534
          %v559 = vunpack.c.l.s4 1966171168
          %v560 = vunpack.c.0.s8 %v559
          %v561 = vlaneseq
          %v562 = vshrl.u32 %v561, 7
          %v563 = vsub.s32 %v560, %v562
          %v564 = vrot.slane %v557, %v563
          %v566 = vunpack.c.l.s4 1966171168
          %v567 = vunpack.c.0.s8 %v566
          %v568 = vlaneseq
          %v569 = vshrl.u32 %v568, 7
          %v570 = vsub.s32 %v567, %v569
          %v571 = vrot.slane %v564, %v570
          %v573 = vsel %vm535, %v571, 0.0
          %574 = vrot.lane.b32.xlu0 %v294, 125
          %v575 = vpop.permute.xlu0 %574
          %576 = vrot.lane.b32.xlu0 %v298, 125
          %v577 = vpop.permute.xlu0 %576
          %vm578 = vcmp.lt.s32.totalorder %v306, 125
          %v579 = vsel %vm578, %v575, %v577
          %v580 = vsel %vm578, %v577, %v575
          %581 = vrot.lane.b32.xlu0 %v314, 125
          %v582 = vpop.permute.xlu0 %581
          %583 = vrot.lane.b32.xlu0 %v318, 125
          %v584 = vpop.permute.xlu0 %583
          %v585 = vsel %vm578, %v582, %v584
          %v586 = vsel %vm578, %v584, %v582
          %vm587 = vcmp.lt.s32.totalorder %v289, 13
          %v590 = vcombine.low %v579, %v580
          %v592 = vunpack.c.l.s4 1966171168
          %v593 = vunpack.c.0.s8 %v592
          %v594 = vlaneseq
          %v595 = vshrl.u32 %v594, 7
          %v596 = vsub.s32 %v593, %v595
          %v597 = vrot.slane %v590, %v596
          %v599 = vunpack.c.l.s4 1966171168
          %v600 = vunpack.c.0.s8 %v599
          %v601 = vlaneseq
          %v602 = vshrl.u32 %v601, 7
          %v603 = vsub.s32 %v600, %v602
          %v604 = vrot.slane %v597, %v603
          %v606 = vsel %vm587, %v604, 0.0
          %v609 = vcombine.low %v585, %v586
          %v611 = vunpack.c.l.s4 1966171168
          %v612 = vunpack.c.0.s8 %v611
          %v613 = vlaneseq
          %v614 = vshrl.u32 %v613, 7
          %v615 = vsub.s32 %v612, %v614
          %v616 = vrot.slane %v609, %v615
          %v618 = vunpack.c.l.s4 1966171168
          %v619 = vunpack.c.0.s8 %v618
          %v620 = vlaneseq
          %v621 = vshrl.u32 %v620, 7
          %v622 = vsub.s32 %v619, %v621
          %v623 = vrot.slane %v616, %v622
          %v625 = vsel %vm587, %v623, 0.0
          %s626 = sld [smem:[#allocation4]]
          %v627 = vstv %s626
          %s628 = sld [smem:[#allocation5]]
          %v629 = vstv %s628
          %v630 = vmul.f32 %v629, %v346
          %s631 = sld [smem:[#allocation5 + $0x31]]
          %v632 = vstv %s631
          %v633 = vmul.f32 %v632, %v365
          %v634 = vadd.f32 %v630, %v633
          %s635 = sld [smem:[#allocation5 + $0x1]]
          %v636 = vstv %s635
          %v637 = vmul.f32 %v636, %v398
          %s638 = sld [smem:[#allocation5 + $0x32]]
          %v639 = vstv %s638
          %v640 = vmul.f32 %v639, %v417
          %v641 = vadd.f32 %v637, %v640
          %v642 = vadd.f32 %v634, %v641
          %s643 = sld [smem:[#allocation5 + $0x2]]
          %v644 = vstv %s643
          %v645 = vmul.f32 %v644, %v450
          %s646 = sld [smem:[#allocation5 + $0x33]]
          %v647 = vstv %s646
          %v648 = vmul.f32 %v647, %v469
          %v649 = vadd.f32 %v645, %v648
          %v650 = vadd.f32 %v642, %v649
          %s651 = sld [smem:[#allocation5 + $0x3]]
          %v652 = vstv %s651
          %v653 = vmul.f32 %v652, %v285
          %s654 = sld [smem:[#allocation5 + $0x34]]
          %v655 = vstv %s654
          %v656 = vmul.f32 %v655, %v286
          %v657 = vadd.f32 %v653, %v656
          %v658 = vadd.f32 %v650, %v657
          %s659 = sld [smem:[#allocation5 + $0x4]]
          %v660 = vstv %s659
          %v661 = vmul.f32 %v660, %v502
          %s662 = sld [smem:[#allocation5 + $0x35]]
          %v663 = vstv %s662
          %v664 = vmul.f32 %v663, %v521
          %v665 = vadd.f32 %v661, %v664
          %v666 = vadd.f32 %v658, %v665
          %s667 = sld [smem:[#allocation5 + $0x5]]
          %v668 = vstv %s667
          %v669 = vmul.f32 %v668, %v554
          %s670 = sld [smem:[#allocation5 + $0x36]]
          %v671 = vstv %s670
          %v672 = vmul.f32 %v671, %v573
          %v673 = vadd.f32 %v669, %v672
          %v674 = vadd.f32 %v666, %v673
          %s675 = sld [smem:[#allocation5 + $0x6]]
          %v676 = vstv %s675
          %v677 = vmul.f32 %v676, %v606
          %s678 = sld [smem:[#allocation5 + $0x37]]
          %v679 = vstv %s678
          %v680 = vmul.f32 %v679, %v625
          %v681 = vadd.f32 %v677, %v680
          %v682 = vadd.f32 %v674, %v681
          %v684 = vlaneseq
          %v685 = vshrl.u32 %v684, 7
          %v686 = vsub.s32 0, %v685
          %v687 = vrot.slane %v682, %v686
          %v688 = vlaneseq
          %v689 = vshrl.u32 %v688, 7
          %v690 = vsub.s32 1, %v689
          %v691 = vrot.slane %v682, %v690
          %694 = vrot.lane.b32.xlu0 %v687, 48
          %v695 = vpop.permute.xlu0 %694
          %696 = vrot.lane.b32.xlu0 %v691, 48
          %v697 = vpop.permute.xlu0 %696
          %vm698 = vcmp.lt.s32.totalorder %v306, 48
          %v699 = vsel %vm698, %v695, %v697
          %v700 = vsel %vm698, %v697, %v695
          %vm701 = vcmp.ge.s32.totalorder %v287, 3
          %v704 = vcombine.low %v700, %v699
          %v706 = vunpack.c.l.s4 1966171168
          %v707 = vunpack.c.0.s8 %v706
          %v708 = vlaneseq
          %v709 = vshrl.u32 %v708, 7
          %v710 = vsub.s32 %v707, %v709
          %v711 = vrot.slane %v704, %v710
          %v713 = vunpack.c.l.s4 1966171168
          %v714 = vunpack.c.0.s8 %v713
          %v715 = vlaneseq
          %v716 = vshrl.u32 %v715, 7
          %v717 = vsub.s32 %v714, %v716
          %v718 = vrot.slane %v711, %v717
          %v720 = vsel %vm701, %v718, 0.0
          %v721 = vadd.f32 %v627, %v720
          %s722 = sld [smem:[#allocation5 + $0x7]]
          %v723 = vstv %s722
          %v724 = vmul.f32 %v723, %v346
          %s725 = sld [smem:[#allocation5 + $0x38]]
          %v726 = vstv %s725
          %v727 = vmul.f32 %v726, %v365
          %v728 = vadd.f32 %v724, %v727
          %s729 = sld [smem:[#allocation5 + $0x8]]
          %v730 = vstv %s729
          %v731 = vmul.f32 %v730, %v398
          %s732 = sld [smem:[#allocation5 + $0x39]]
          %v733 = vstv %s732
          %v734 = vmul.f32 %v733, %v417
          %v735 = vadd.f32 %v731, %v734
          %v736 = vadd.f32 %v728, %v735
          %s737 = sld [smem:[#allocation5 + $0x9]]
          %v738 = vstv %s737
          %v739 = vmul.f32 %v738, %v450
          %s740 = sld [smem:[#allocation5 + $0x3a]]
          %v741 = vstv %s740
          %v742 = vmul.f32 %v741, %v469
          %v743 = vadd.f32 %v739, %v742
          %v744 = vadd.f32 %v736, %v743
          %s745 = sld [smem:[#allocation5 + $0xa]]
          %v746 = vstv %s745
          %v747 = vmul.f32 %v746, %v285
          %s748 = sld [smem:[#allocation5 + $0x3b]]
          %v749 = vstv %s748
          %v750 = vmul.f32 %v749, %v286
          %v751 = vadd.f32 %v747, %v750
          %v752 = vadd.f32 %v744, %v751
          %s753 = sld [smem:[#allocation5 + $0xb]]
          %v754 = vstv %s753
          %v755 = vmul.f32 %v754, %v502
          %s756 = sld [smem:[#allocation5 + $0x3c]]
          %v757 = vstv %s756
          %v758 = vmul.f32 %v757, %v521
          %v759 = vadd.f32 %v755, %v758
          %v760 = vadd.f32 %v752, %v759
          %s761 = sld [smem:[#allocation5 + $0xc]]
          %v762 = vstv %s761
          %v763 = vmul.f32 %v762, %v554
          %s764 = sld [smem:[#allocation5 + $0x3d]]
          %v765 = vstv %s764
          %v766 = vmul.f32 %v765, %v573
          %v767 = vadd.f32 %v763, %v766
          %v768 = vadd.f32 %v760, %v767
          %s769 = sld [smem:[#allocation5 + $0xd]]
          %v770 = vstv %s769
          %v771 = vmul.f32 %v770, %v606
          %s772 = sld [smem:[#allocation5 + $0x3e]]
          %v773 = vstv %s772
          %v774 = vmul.f32 %v773, %v625
          %v775 = vadd.f32 %v771, %v774
          %v776 = vadd.f32 %v768, %v775
          %v778 = vlaneseq
          %v779 = vshrl.u32 %v778, 7
          %v780 = vsub.s32 0, %v779
          %v781 = vrot.slane %v776, %v780
          %v782 = vlaneseq
          %v783 = vshrl.u32 %v782, 7
          %v784 = vsub.s32 1, %v783
          %v785 = vrot.slane %v776, %v784
          %788 = vrot.lane.b32.xlu0 %v781, 32
          %v789 = vpop.permute.xlu0 %788
          %790 = vrot.lane.b32.xlu0 %v785, 32
          %v791 = vpop.permute.xlu0 %790
          %vm792 = vcmp.lt.s32.totalorder %v306, 32
          %v793 = vsel %vm792, %v789, %v791
          %v794 = vsel %vm792, %v791, %v789
          %vm795 = vcmp.ge.s32.totalorder %v287, 2
          %v798 = vcombine.low %v794, %v793
          %v800 = vunpack.c.l.s4 1966171168
          %v801 = vunpack.c.0.s8 %v800
          %v802 = vlaneseq
          %v803 = vshrl.u32 %v802, 7
          %v804 = vsub.s32 %v801, %v803
          %v805 = vrot.slane %v798, %v804
          %v807 = vunpack.c.l.s4 1966171168
          %v808 = vunpack.c.0.s8 %v807
          %v809 = vlaneseq
          %v810 = vshrl.u32 %v809, 7
          %v811 = vsub.s32 %v808, %v810
          %v812 = vrot.slane %v805, %v811
          %v814 = vsel %vm795, %v812, 0.0
          %v815 = vadd.f32 %v721, %v814
          %s816 = sld [smem:[#allocation5 + $0xe]]
          %v817 = vstv %s816
          %v818 = vmul.f32 %v817, %v346
          %s819 = sld [smem:[#allocation5 + $0x3f]]
          %v820 = vstv %s819
          %v821 = vmul.f32 %v820, %v365
          %v822 = vadd.f32 %v818, %v821
          %s823 = sld [smem:[#allocation5 + $0xf]]
          %v824 = vstv %s823
          %v825 = vmul.f32 %v824, %v398
          %s826 = sld [smem:[#allocation5 + $0x40]]
          %v827 = vstv %s826
          %v828 = vmul.f32 %v827, %v417
          %v829 = vadd.f32 %v825, %v828
          %v830 = vadd.f32 %v822, %v829
          %s831 = sld [smem:[#allocation5 + $0x10]]
          %v832 = vstv %s831
          %v833 = vmul.f32 %v832, %v450
          %s834 = sld [smem:[#allocation5 + $0x41]]
          %v835 = vstv %s834
          %v836 = vmul.f32 %v835, %v469
          %v837 = vadd.f32 %v833, %v836
          %v838 = vadd.f32 %v830, %v837
          %s839 = sld [smem:[#allocation5 + $0x11]]
          %v840 = vstv %s839
          %v841 = vmul.f32 %v840, %v285
          %s842 = sld [smem:[#allocation5 + $0x42]]
          %v843 = vstv %s842
          %v844 = vmul.f32 %v843, %v286
          %v845 = vadd.f32 %v841, %v844
          %v846 = vadd.f32 %v838, %v845
          %s847 = sld [smem:[#allocation5 + $0x12]]
          %v848 = vstv %s847
          %v849 = vmul.f32 %v848, %v502
          %s850 = sld [smem:[#allocation5 + $0x43]]
          %v851 = vstv %s850
          %v852 = vmul.f32 %v851, %v521
          %v853 = vadd.f32 %v849, %v852
          %v854 = vadd.f32 %v846, %v853
          %s855 = sld [smem:[#allocation5 + $0x13]]
          %v856 = vstv %s855
          %v857 = vmul.f32 %v856, %v554
          %s858 = sld [smem:[#allocation5 + $0x44]]
          %v859 = vstv %s858
          %v860 = vmul.f32 %v859, %v573
          %v861 = vadd.f32 %v857, %v860
          %v862 = vadd.f32 %v854, %v861
          %s863 = sld [smem:[#allocation5 + $0x14]]
          %v864 = vstv %s863
          %v865 = vmul.f32 %v864, %v606
          %s866 = sld [smem:[#allocation5 + $0x45]]
          %v867 = vstv %s866
          %v868 = vmul.f32 %v867, %v625
          %v869 = vadd.f32 %v865, %v868
          %v870 = vadd.f32 %v862, %v869
          %v872 = vlaneseq
          %v873 = vshrl.u32 %v872, 7
          %v874 = vsub.s32 0, %v873
          %v875 = vrot.slane %v870, %v874
          %v876 = vlaneseq
          %v877 = vshrl.u32 %v876, 7
          %v878 = vsub.s32 1, %v877
          %v879 = vrot.slane %v870, %v878
          %882 = vrot.lane.b32.xlu0 %v875, 16
          %v883 = vpop.permute.xlu0 %882
          %884 = vrot.lane.b32.xlu0 %v879, 16
          %v885 = vpop.permute.xlu0 %884
          %vm886 = vcmp.lt.s32.totalorder %v306, 16
          %v887 = vsel %vm886, %v883, %v885
          %v888 = vsel %vm886, %v885, %v883
          %vm889 = vcmp.ge.s32.totalorder %v287, 1
          %v892 = vcombine.low %v888, %v887
          %v894 = vunpack.c.l.s4 1966171168
          %v895 = vunpack.c.0.s8 %v894
          %v896 = vlaneseq
          %v897 = vshrl.u32 %v896, 7
          %v898 = vsub.s32 %v895, %v897
          %v899 = vrot.slane %v892, %v898
          %v901 = vunpack.c.l.s4 1966171168
          %v902 = vunpack.c.0.s8 %v901
          %v903 = vlaneseq
          %v904 = vshrl.u32 %v903, 7
          %v905 = vsub.s32 %v902, %v904
          %v906 = vrot.slane %v899, %v905
          %v908 = vsel %vm889, %v906, 0.0
          %v909 = vadd.f32 %v815, %v908
          %s910 = sld [smem:[#allocation5 + $0x15]]
          %v911 = vstv %s910
          %v912 = vmul.f32 %v911, %v346
          %s913 = sld [smem:[#allocation5 + $0x46]]
          %v914 = vstv %s913
          %v915 = vmul.f32 %v914, %v365
          %v916 = vadd.f32 %v912, %v915
          %s917 = sld [smem:[#allocation5 + $0x16]]
          %v918 = vstv %s917
          %v919 = vmul.f32 %v918, %v398
          %s920 = sld [smem:[#allocation5 + $0x47]]
          %v921 = vstv %s920
          %v922 = vmul.f32 %v921, %v417
          %v923 = vadd.f32 %v919, %v922
          %v924 = vadd.f32 %v916, %v923
          %s925 = sld [smem:[#allocation5 + $0x17]]
          %v926 = vstv %s925
          %v927 = vmul.f32 %v926, %v450
          %s928 = sld [smem:[#allocation5 + $0x48]]
          %v929 = vstv %s928
          %v930 = vmul.f32 %v929, %v469
          %v931 = vadd.f32 %v927, %v930
          %v932 = vadd.f32 %v924, %v931
          %s933 = sld [smem:[#allocation5 + $0x18]]
          %v934 = vstv %s933
          %v935 = vmul.f32 %v934, %v285
          %s936 = sld [smem:[#allocation5 + $0x49]]
          %v937 = vstv %s936
          %v938 = vmul.f32 %v937, %v286
          %v939 = vadd.f32 %v935, %v938
          %v940 = vadd.f32 %v932, %v939
          %s941 = sld [smem:[#allocation5 + $0x19]]
          %v942 = vstv %s941
          %v943 = vmul.f32 %v942, %v502
          %s944 = sld [smem:[#allocation5 + $0x4a]]
          %v945 = vstv %s944
          %v946 = vmul.f32 %v945, %v521
          %v947 = vadd.f32 %v943, %v946
          %v948 = vadd.f32 %v940, %v947
          %s949 = sld [smem:[#allocation5 + $0x1a]]
          %v950 = vstv %s949
          %v951 = vmul.f32 %v950, %v554
          %s952 = sld [smem:[#allocation5 + $0x4b]]
          %v953 = vstv %s952
          %v954 = vmul.f32 %v953, %v573
          %v955 = vadd.f32 %v951, %v954
          %v956 = vadd.f32 %v948, %v955
          %s957 = sld [smem:[#allocation5 + $0x1b]]
          %v958 = vstv %s957
          %v959 = vmul.f32 %v958, %v606
          %s960 = sld [smem:[#allocation5 + $0x4c]]
          %v961 = vstv %s960
          %v962 = vmul.f32 %v961, %v625
          %v963 = vadd.f32 %v959, %v962
          %v964 = vadd.f32 %v956, %v963
          %v965 = vadd.f32 %v909, %v964
          %s966 = sld [smem:[#allocation5 + $0x1c]]
          %v967 = vstv %s966
          %v968 = vmul.f32 %v967, %v346
          %s969 = sld [smem:[#allocation5 + $0x4d]]
          %v970 = vstv %s969
          %v971 = vmul.f32 %v970, %v365
          %v972 = vadd.f32 %v968, %v971
          %s973 = sld [smem:[#allocation5 + $0x1d]]
          %v974 = vstv %s973
          %v975 = vmul.f32 %v974, %v398
          %s976 = sld [smem:[#allocation5 + $0x4e]]
          %v977 = vstv %s976
          %v978 = vmul.f32 %v977, %v417
          %v979 = vadd.f32 %v975, %v978
          %v980 = vadd.f32 %v972, %v979
          %s981 = sld [smem:[#allocation5 + $0x1e]]
          %v982 = vstv %s981
          %v983 = vmul.f32 %v982, %v450
          %s984 = sld [smem:[#allocation5 + $0x4f]]
          %v985 = vstv %s984
          %v986 = vmul.f32 %v985, %v469
          %v987 = vadd.f32 %v983, %v986
          %v988 = vadd.f32 %v980, %v987
          %s989 = sld [smem:[#allocation5 + $0x1f]]
          %v990 = vstv %s989
          %v991 = vmul.f32 %v990, %v285
          %s992 = sld [smem:[#allocation5 + $0x50]]
          %v993 = vstv %s992
          %v994 = vmul.f32 %v993, %v286
          %v995 = vadd.f32 %v991, %v994
          %v996 = vadd.f32 %v988, %v995
          %s997 = sld [smem:[#allocation5 + $0x20]]
          %v998 = vstv %s997
          %v999 = vmul.f32 %v998, %v502
          %s1000 = sld [smem:[#allocation5 + $0x51]]
          %v1001 = vstv %s1000
          %v1002 = vmul.f32 %v1001, %v521
          %v1003 = vadd.f32 %v999, %v1002
          %v1004 = vadd.f32 %v996, %v1003
          %s1005 = sld [smem:[#allocation5 + $0x21]]
          %v1006 = vstv %s1005
          %v1007 = vmul.f32 %v1006, %v554
          %s1008 = sld [smem:[#allocation5 + $0x52]]
          %v1009 = vstv %s1008
          %v1010 = vmul.f32 %v1009, %v573
          %v1011 = vadd.f32 %v1007, %v1010
          %v1012 = vadd.f32 %v1004, %v1011
          %s1013 = sld [smem:[#allocation5 + $0x22]]
          %v1014 = vstv %s1013
          %v1015 = vmul.f32 %v1014, %v606
          %s1016 = sld [smem:[#allocation5 + $0x53]]
          %v1017 = vstv %s1016
          %v1018 = vmul.f32 %v1017, %v625
          %v1019 = vadd.f32 %v1015, %v1018
          %v1020 = vadd.f32 %v1012, %v1019
          %v1022 = vlaneseq
          %v1023 = vshrl.u32 %v1022, 7
          %v1024 = vsub.s32 0, %v1023
          %v1025 = vrot.slane %v1020, %v1024
          %v1026 = vlaneseq
          %v1027 = vshrl.u32 %v1026, 7
          %v1028 = vsub.s32 1, %v1027
          %v1029 = vrot.slane %v1020, %v1028
          %1032 = vrot.lane.b32.xlu0 %v1025, 112
          %v1033 = vpop.permute.xlu0 %1032
          %1034 = vrot.lane.b32.xlu0 %v1029, 112
          %v1035 = vpop.permute.xlu0 %1034
          %vm1036 = vcmp.lt.s32.totalorder %v306, 112
          %v1037 = vsel %vm1036, %v1033, %v1035
          %v1038 = vsel %vm1036, %v1035, %v1033
          %vm1039 = vcmp.lt.s32.totalorder %v287, 15
          %v1042 = vcombine.low %v1037, %v1038
          %v1044 = vunpack.c.l.s4 1966171168
          %v1045 = vunpack.c.0.s8 %v1044
          %v1046 = vlaneseq
          %v1047 = vshrl.u32 %v1046, 7
          %v1048 = vsub.s32 %v1045, %v1047
          %v1049 = vrot.slane %v1042, %v1048
          %v1051 = vunpack.c.l.s4 1966171168
          %v1052 = vunpack.c.0.s8 %v1051
          %v1053 = vlaneseq
          %v1054 = vshrl.u32 %v1053, 7
          %v1055 = vsub.s32 %v1052, %v1054
          %v1056 = vrot.slane %v1049, %v1055
          %v1058 = vsel %vm1039, %v1056, 0.0
          %v1059 = vadd.f32 %v965, %v1058
          %s1060 = sld [smem:[#allocation5 + $0x23]]
          %v1061 = vstv %s1060
          %v1062 = vmul.f32 %v1061, %v346
          %s1063 = sld [smem:[#allocation5 + $0x54]]
          %v1064 = vstv %s1063
          %v1065 = vmul.f32 %v1064, %v365
          %v1066 = vadd.f32 %v1062, %v1065
          %s1067 = sld [smem:[#allocation5 + $0x24]]
          %v1068 = vstv %s1067
          %v1069 = vmul.f32 %v1068, %v398
          %s1070 = sld [smem:[#allocation5 + $0x55]]
          %v1071 = vstv %s1070
          %v1072 = vmul.f32 %v1071, %v417
          %v1073 = vadd.f32 %v1069, %v1072
          %v1074 = vadd.f32 %v1066, %v1073
          %s1075 = sld [smem:[#allocation5 + $0x25]]
          %v1076 = vstv %s1075
          %v1077 = vmul.f32 %v1076, %v450
          %s1078 = sld [smem:[#allocation5 + $0x56]]
          %v1079 = vstv %s1078
          %v1080 = vmul.f32 %v1079, %v469
          %v1081 = vadd.f32 %v1077, %v1080
          %v1082 = vadd.f32 %v1074, %v1081
          %s1083 = sld [smem:[#allocation5 + $0x26]]
          %v1084 = vstv %s1083
          %v1085 = vmul.f32 %v1084, %v285
          %s1086 = sld [smem:[#allocation5 + $0x57]]
          %v1087 = vstv %s1086
          %v1088 = vmul.f32 %v1087, %v286
          %v1089 = vadd.f32 %v1085, %v1088
          %v1090 = vadd.f32 %v1082, %v1089
          %s1091 = sld [smem:[#allocation5 + $0x27]]
          %v1092 = vstv %s1091
          %v1093 = vmul.f32 %v1092, %v502
          %s1094 = sld [smem:[#allocation5 + $0x58]]
          %v1095 = vstv %s1094
          %v1096 = vmul.f32 %v1095, %v521
          %v1097 = vadd.f32 %v1093, %v1096
          %v1098 = vadd.f32 %v1090, %v1097
          %s1099 = sld [smem:[#allocation5 + $0x28]]
          %v1100 = vstv %s1099
          %v1101 = vmul.f32 %v1100, %v554
          %s1102 = sld [smem:[#allocation5 + $0x59]]
          %v1103 = vstv %s1102
          %v1104 = vmul.f32 %v1103, %v573
          %v1105 = vadd.f32 %v1101, %v1104
          %v1106 = vadd.f32 %v1098, %v1105
          %s1107 = sld [smem:[#allocation5 + $0x29]]
          %v1108 = vstv %s1107
          %v1109 = vmul.f32 %v1108, %v606
          %s1110 = sld [smem:[#allocation5 + $0x5a]]
          %v1111 = vstv %s1110
          %v1112 = vmul.f32 %v1111, %v625
          %v1113 = vadd.f32 %v1109, %v1112
          %v1114 = vadd.f32 %v1106, %v1113
          %v1116 = vlaneseq
          %v1117 = vshrl.u32 %v1116, 7
          %v1118 = vsub.s32 0, %v1117
          %v1119 = vrot.slane %v1114, %v1118
          %v1120 = vlaneseq
          %v1121 = vshrl.u32 %v1120, 7
          %v1122 = vsub.s32 1, %v1121
          %v1123 = vrot.slane %v1114, %v1122
          %1126 = vrot.lane.b32.xlu0 %v1119, 96
          %v1127 = vpop.permute.xlu0 %1126
          %1128 = vrot.lane.b32.xlu0 %v1123, 96
          %v1129 = vpop.permute.xlu0 %1128
          %vm1130 = vcmp.lt.s32.totalorder %v306, 96
          %v1131 = vsel %vm1130, %v1127, %v1129
          %v1132 = vsel %vm1130, %v1129, %v1127
          %vm1133 = vcmp.lt.s32.totalorder %v287, 14
          %v1136 = vcombine.low %v1131, %v1132
          %v1138 = vunpack.c.l.s4 1966171168
          %v1139 = vunpack.c.0.s8 %v1138
          %v1140 = vlaneseq
          %v1141 = vshrl.u32 %v1140, 7
          %v1142 = vsub.s32 %v1139, %v1141
          %v1143 = vrot.slane %v1136, %v1142
          %v1145 = vunpack.c.l.s4 1966171168
          %v1146 = vunpack.c.0.s8 %v1145
          %v1147 = vlaneseq
          %v1148 = vshrl.u32 %v1147, 7
          %v1149 = vsub.s32 %v1146, %v1148
          %v1150 = vrot.slane %v1143, %v1149
          %v1152 = vsel %vm1133, %v1150, 0.0
          %v1153 = vadd.f32 %v1059, %v1152
          %s1154 = sld [smem:[#allocation5 + $0x2a]]
          %v1155 = vstv %s1154
          %v1156 = vmul.f32 %v1155, %v346
          %s1157 = sld [smem:[#allocation5 + $0x5b]]
          %v1158 = vstv %s1157
          %v1159 = vmul.f32 %v1158, %v365
          %v1160 = vadd.f32 %v1156, %v1159
          %s1161 = sld [smem:[#allocation5 + $0x2b]]
          %v1162 = vstv %s1161
          %v1163 = vmul.f32 %v1162, %v398
          %s1164 = sld [smem:[#allocation5 + $0x5c]]
          %v1165 = vstv %s1164
          %v1166 = vmul.f32 %v1165, %v417
          %v1167 = vadd.f32 %v1163, %v1166
          %v1168 = vadd.f32 %v1160, %v1167
          %s1169 = sld [smem:[#allocation5 + $0x2c]]
          %v1170 = vstv %s1169
          %v1171 = vmul.f32 %v1170, %v450
          %s1172 = sld [smem:[#allocation5 + $0x5d]]
          %v1173 = vstv %s1172
          %v1174 = vmul.f32 %v1173, %v469
          %v1175 = vadd.f32 %v1171, %v1174
          %v1176 = vadd.f32 %v1168, %v1175
          %s1177 = sld [smem:[#allocation5 + $0x2d]]
          %v1178 = vstv %s1177
          %v1179 = vmul.f32 %v1178, %v285
          %s1180 = sld [smem:[#allocation5 + $0x5e]]
          %v1181 = vstv %s1180
          %v1182 = vmul.f32 %v1181, %v286
          %v1183 = vadd.f32 %v1179, %v1182
          %v1184 = vadd.f32 %v1176, %v1183
          %s1185 = sld [smem:[#allocation5 + $0x2e]]
          %v1186 = vstv %s1185
          %v1187 = vmul.f32 %v1186, %v502
          %s1188 = sld [smem:[#allocation5 + $0x5f]]
          %v1189 = vstv %s1188
          %v1190 = vmul.f32 %v1189, %v521
          %v1191 = vadd.f32 %v1187, %v1190
          %v1192 = vadd.f32 %v1184, %v1191
          %s1193 = sld [smem:[#allocation5 + $0x2f]]
          %v1194 = vstv %s1193
          %v1195 = vmul.f32 %v1194, %v554
          %s1196 = sld [smem:[#allocation5 + $0x60]]
          %v1197 = vstv %s1196
          %v1198 = vmul.f32 %v1197, %v573
          %v1199 = vadd.f32 %v1195, %v1198
          %v1200 = vadd.f32 %v1192, %v1199
          %s1201 = sld [smem:[#allocation5 + $0x30]]
          %v1202 = vstv %s1201
          %v1203 = vmul.f32 %v1202, %v606
          %s1204 = sld [smem:[#allocation5 + $0x61]]
          %v1205 = vstv %s1204
          %v1206 = vmul.f32 %v1205, %v625
          %v1207 = vadd.f32 %v1203, %v1206
          %v1208 = vadd.f32 %v1200, %v1207
          %v1210 = vlaneseq
          %v1211 = vshrl.u32 %v1210, 7
          %v1212 = vsub.s32 0, %v1211
          %v1213 = vrot.slane %v1208, %v1212
          %v1214 = vlaneseq
          %v1215 = vshrl.u32 %v1214, 7
          %v1216 = vsub.s32 1, %v1215
          %v1217 = vrot.slane %v1208, %v1216
          %1220 = vrot.lane.b32.xlu0 %v1213, 80
          %v1221 = vpop.permute.xlu0 %1220
          %1222 = vrot.lane.b32.xlu0 %v1217, 80
          %v1223 = vpop.permute.xlu0 %1222
          %vm1224 = vcmp.lt.s32.totalorder %v306, 80
          %v1225 = vsel %vm1224, %v1221, %v1223
          %v1226 = vsel %vm1224, %v1223, %v1221
          %vm1227 = vcmp.lt.s32.totalorder %v287, 13
          %v1230 = vcombine.low %v1225, %v1226
          %v1232 = vunpack.c.l.s4 1966171168
          %v1233 = vunpack.c.0.s8 %v1232
          %v1234 = vlaneseq
          %v1235 = vshrl.u32 %v1234, 7
          %v1236 = vsub.s32 %v1233, %v1235
          %v1237 = vrot.slane %v1230, %v1236
          %v1239 = vunpack.c.l.s4 1966171168
          %v1240 = vunpack.c.0.s8 %v1239
          %v1241 = vlaneseq
          %v1242 = vshrl.u32 %v1241, 7
          %v1243 = vsub.s32 %v1240, %v1242
          %v1244 = vrot.slane %v1237, %v1243
          %v1246 = vsel %vm1227, %v1244, 0.0
          %v1247 = vadd.f32 %v1153, %v1246
          %v1248 = vxor.u32 %v1247, 2147483648
          %v1249 = vmul.f32 %v1248, 1.442695
          %v1250 = vpow.pop %v1249
          %v1251 = vadd.f32 %v1250, 1.0
          %v1252 = vrcp.pop %v1251
          %v1253 = vmul.f32 1.0, %v1252
          %v1254 = vlaneseq
          %vm1255 = vcmp.ge.s32.totalorder %v1254, 0
          %vm1256 = vcmp.lt.s32.totalorder %v1254, 256
          %vm1257 = vmand %vm1255, %vm1256
          %1258 = vst.msk [vmem:[%s244] sm:$0x3] %vm1257, %v1253
        $region56: #{tpu_custom_call.1} parent=35 // pred_fallthru
          _
        %s1259 = sand.u32 %s134, 1
        %s1260 = scalar_lea.sflag [#allocation7], %s1259
        %s1261 = sand.u32 %s134, 1
        %s1262 = smul.addr %s1261, 2
        %s1263 = scalar_lea.vmem [#allocation10], %s1262
        // Predicated region
        $region57: #{tpu_custom_call.1} parent=35 // pred_check
          %p1264 = pneg %p144
        $region58: #{tpu_custom_call.1} parent=35 // pred_check_branch
          %1266 = sbr.rel (%p1264) target = $region60
        $region59: #{tpu_custom_call.1} parent=35 // pred_region
          %s1268 = ssub.s32 32, 32
          %1269 = vsyncadd %s1260, %s1268
          %s1270 = smul.addr %s27, 2
          %s1271 = smul.addr %s1270, 16
          %s1272 = scalar_lea.hbm %s4, %s1271
          %s1274 = sshll.u32 %s1263, 4
          %s1275 = int_to_ptr.vmem [resolvable:$true] %s1274
          %1277 = dma.vmem_to_hbm [thread:$0]  %s1275, 32, %s1272, %s1260
        $region60: #{tpu_custom_call.1} parent=35 // pred_fallthru
          _
      $region36: #{tpu_custom_call.1} parent=5 // pred_fallthru
        _
      %p1278 = scmp.le.s32.totalorder 2, %s18
      // Predicated region
      $region61: #{tpu_custom_call.1} parent=5 // pred_check
        %p1279 = pneg %p1278
      $region62: #{tpu_custom_call.1} parent=5 // pred_check_branch
        %1281 = sbr.rel (%p1279) target = $region64
      $region63: #{tpu_custom_call.1} parent=5 // pred_region
        %s1282 = ssub.s32 %s18, 2
        // Predicated region
        $region65: #{tpu_custom_call.1} parent=63 // pred_check
          %p1283 = pneg %p150
        $region66: #{tpu_custom_call.1} parent=63 // pred_check_branch
          %1285 = sbr.rel (%p1283) target = $region68
        $region67: #{tpu_custom_call.1} parent=63 // pred_region
          %s1286 = sand.u32 %s135, 1
          %s1287 = scalar_lea.sflag [#allocation7], %s1286
          %s1288 = sand.u32 %s135, 1
          %s1289 = smul.addr %s1288, 2
          %s1290 = scalar_lea.vmem [#allocation10], %s1289
          %1291 = dma.done %s1287, 32
        $region68: #{tpu_custom_call.1} parent=63 // pred_fallthru
          _
      $region64: #{tpu_custom_call.1} parent=5 // pred_fallthru
        _
    $region6: #{tpu_custom_call.1} parent=1 // loop_footer
      %s22 = sadd.s32 1, %s18
    $region7: #{tpu_custom_call.1} parent=1 // loop_footer_branch
      %17 = sbr.rel target = $region3
    $region8: #{tpu_custom_call.1} parent=1 // loop_exit
      _
    %1292 = vsyncpa [#allocation6], 1
    %s1293 = scalar_lea.sflag [#allocation6], 1
    %1294 = vsyncpa %s1293, 1
    %1295 = vsyncpa [#allocation7], 1
    %s1296 = scalar_lea.sflag [#allocation7], 1
    %1297 = vsyncpa %s1296, 1
    %1298 = vsyncpa [#allocation8], 1
    %s1299 = scalar_lea.sflag [#allocation8], 1
    %1300 = vsyncpa %s1299, 1

</llo_original>
